<compile_context>
chip_gen: v6e
topology: v6e:2x2x1
jax: 0.10.0
libtpu: 0.0.40
codegen_flags: <defaults>
</compile_context>

<pallas_src>
import functools

import jax
import jax.numpy as jnp
from jax import lax
from jax.experimental import pallas as pl
from jax.experimental.pallas import tpu as pltpu


# ---------------------------------------------------------------------------
# One-time pltpu.roll capability / direction probe
# ---------------------------------------------------------------------------
_ROLL_MODE = None  # "fwd" (matches jnp.roll), "rev" (opposite), "none" (unavailable)


def _roll_mode():
    """Check that pltpu.roll lowers for packed-bf16 sublane rotation and find
    its direction.  Falls back to slice+concat shifts ("none") otherwise."""
    global _ROLL_MODE
    if _ROLL_MODE is not None:
        return _ROLL_MODE

    def probe_kernel(x_ref, o_ref):
        o_ref[...] = pltpu.roll(x_ref[...], shift=1, axis=1)

    try:
        seq = jnp.arange(16, dtype=jnp.float32)[None, :, None]
        xp = jnp.broadcast_to(seq, (2, 16, 128)).astype(jnp.bfloat16)
        out = pl.pallas_call(
            probe_kernel,
            out_shape=jax.ShapeDtypeStruct((2, 16, 128), jnp.bfloat16),
        )(xp)
        v = float(jax.device_get(out)[0, 0, 0])
        if v == 15.0:
            _ROLL_MODE = "fwd"      # roll(x, 1)[l] == x[(l-1) % L]  (jnp.roll)
        elif v == 1.0:
            _ROLL_MODE = "rev"      # roll(x, 1)[l] == x[(l+1) % L]
        else:
            _ROLL_MODE = "none"
    except Exception:
        _ROLL_MODE = "none"
    return _ROLL_MODE


# ---------------------------------------------------------------------------
# Kernel
# ---------------------------------------------------------------------------
def _make_kernel(roll_mode):
    def kernel(x_ref, w_ref, o_ref):
        # x_ref: (bb, L, Cin)   bf16 activations (bb whole sequences)
        # w_ref: (3*Cin, Dm)    bf16 taps; row block k holds W_k^T
        # o_ref: (bb, L, Dm)    output (f32 accumulation on the MXU)
        bb, L, C = x_ref.shape
        D = o_ref.shape[-1]
        x = x_ref[...]

        if roll_mode == "none" or L == 1:
            # Known-good fallback: circular shift via static slices + concat,
            # three K=Cin matmuls accumulated in f32.
            if L == 1:
                x_prev, x_next = x, x
            else:
                x_prev = jnp.concatenate([x[:, L - 1:, :], x[:, :L - 1, :]], axis=1)
                x_next = jnp.concatenate([x[:, 1:, :], x[:, :1, :]], axis=1)
            xp = x_prev.reshape(bb * L, C)
            xc = x.reshape(bb * L, C)
            xn = x_next.reshape(bb * L, C)
            acc = jnp.dot(xp, w_ref[0:C, :], preferred_element_type=jnp.float32)
            acc = acc + jnp.dot(xc, w_ref[C:2 * C, :],
                                preferred_element_type=jnp.float32)
            acc = acc + jnp.dot(xn, w_ref[2 * C:3 * C, :],
                                preferred_element_type=jnp.float32)
        else:
            # Circular shifts as XLU sublane rotations (no VPU masked copies).
            if roll_mode == "fwd":
                prev_shift, next_shift = 1, L - 1
            else:  # "rev"
                prev_shift, next_shift = L - 1, 1
            x_prev = pltpu.roll(x, shift=prev_shift, axis=1)   # x[(l-1) % L]
            x_next = pltpu.roll(x, shift=next_shift, axis=1)   # x[(l+1) % L]
            # Fuse the three taps into one K=3*Cin matmul: one MXU result
            # chain, no f32 adds, 3x deeper contraction.
            lhs = jnp.concatenate([x_prev, x, x_next], axis=-1)
            acc = jnp.dot(lhs.reshape(bb * L, 3 * C), w_ref[...],
                          preferred_element_type=jnp.float32)

        o_ref[...] = acc.reshape(bb, L, D).astype(o_ref.dtype)

    return kernel


# ---------------------------------------------------------------------------
# Wrapper
# ---------------------------------------------------------------------------
def _choose_batch_block(B, L, Cin, Dm, out_itemsize):
    """Largest bb that divides B, keeps a >=2-step grid when B >= 2 (so both
    v7x TensorCores get work), and fits a conservative VMEM budget."""
    def vmem_per_step(bb):
        x_blk = bb * L * Cin * 2                # bf16 input block
        o_blk = bb * L * Dm * out_itemsize      # output block
        w_blk = 3 * Cin * Dm * 2                # bf16 taps
        # 2x double-buffered DMA blocks + in-kernel temporaries:
        # two rolled copies + fused (bb, L, 3*Cin) LHS + f32 accumulator.
        tmp = 5 * x_blk + bb * L * Dm * 4
        return 2 * (x_blk + o_blk + w_blk) + tmp

    budget = 24 * 1024 * 1024   # headroom under v7x's 32 MiB scoped-VMEM default
    best = 1
    for bb in range(1, B + 1):
        if B % bb:
            continue
        if B >= 2 and B // bb < 2:   # keep >= 2 parallel grid steps
            continue
        if vmem_per_step(bb) > budget:
            continue
        best = bb
    return best


@functools.partial(jax.jit, static_argnames=("out_dtype", "roll_mode"))
def _token_embedding_impl(x, w, *, out_dtype, roll_mode):
    B, L, Cin = x.shape
    Dm, Cin_w, K = w.shape
    assert Cin_w == Cin and K == 3

    out_dtype = jnp.dtype(x.dtype if out_dtype is None else out_dtype)
    bb = _choose_batch_block(B, L, Cin, Dm, out_dtype.itemsize)

    # bf16 MXU operands cast ONCE in the wrapper (x read from HBM once).
    x_bf = x.astype(jnp.bfloat16)
    # torch weight (d_model, c_in, 3) -> (3, c_in, d_model) -> (3*c_in, d_model):
    # row block k holds W_k^T, matching the [x_prev | x | x_next] LHS layout.
    w_fused = jnp.transpose(w, (2, 1, 0)).reshape(3 * Cin, Dm).astype(jnp.bfloat16)

    flops = 2 * B * L * (3 * Cin) * Dm
    bytes_accessed = (B * L * Cin * 2 + 3 * Cin * Dm * 2
                      + B * L * Dm * out_dtype.itemsize)

    return pl.pallas_call(
        _make_kernel(roll_mode),
        out_shape=jax.ShapeDtypeStruct((B, L, Dm), out_dtype),
        grid_spec=pltpu.PrefetchScalarGridSpec(
            num_scalar_prefetch=0,
            grid=(B // bb,),
            in_specs=[
                pl.BlockSpec((bb, L, Cin), lambda i: (i, 0, 0)),
                pl.BlockSpec((3 * Cin, Dm), lambda i: (0, 0)),  # grid-invariant taps
            ],
            out_specs=pl.BlockSpec((bb, L, Dm), lambda i: (i, 0, 0)),
        ),
        compiler_params=pltpu.CompilerParams(
            dimension_semantics=("parallel",),
            vmem_limit_bytes=32 * 1024 * 1024,
        ),
        cost_estimate=pl.CostEstimate(
            flops=flops, transcendentals=0, bytes_accessed=bytes_accessed),
    )(x_bf, w_fused)


def token_embedding(x, w, *, out_dtype=None):
    """TokenEmbedding forward. x: (B, L, c_in); w: (d_model, c_in, 3) torch
    Conv1d weight (kernel=3, circular padding, no bias) -> (B, L, d_model).

    Pass out_dtype=jnp.bfloat16 to halve the dominant HBM writeback when the
    consumer accepts bf16; default keeps x.dtype (matches the torch module).
    """
    mode = _roll_mode()
    try:
        return _token_embedding_impl(x, w, out_dtype=out_dtype, roll_mode=mode)
    except Exception:
        if mode == "none":
            raise
        # Safety net: fall back to the slice+concat / unfused formulation.
        return _token_embedding_impl(x, w, out_dtype=out_dtype, roll_mode="none")


# ---------------------------------------------------------------------------
# Reference & demo
# ---------------------------------------------------------------------------
def _reference(x, w):
    """Independent f32 reference: explicit circular pad + lax 1-D convolution."""
    x_ncl = jnp.transpose(x, (0, 2, 1)).astype(jnp.float32)          # (B, Cin, L)
    x_pad = jnp.concatenate([x_ncl[:, :, -1:], x_ncl, x_ncl[:, :, :1]], axis=-1)
    y = lax.conv_general_dilated(
        x_pad, w.astype(jnp.float32),
        window_strides=(1,), padding="VALID",
        dimension_numbers=("NCH", "OIH", "NCH"))
    return jnp.transpose(y, (0, 2, 1))                               # (B, L, Dm)


if __name__ == "__main__":
    # Small but tile-friendly config: c_in=64, d_model=128, seq=128, batch=8.
    B, L, Cin, Dm = 8, 128, 64, 128

    key = jax.random.PRNGKey(0)
    kx, kw = jax.random.split(key)

    x = jax.random.normal(kx, (B, L, Cin), dtype=jnp.float32)

    # Synthetic kaiming_normal(fan_in, leaky_relu) init for the Conv1d weight
    # (shape (d_model, c_in, kernel_size=3), no bias).
    fan_in = Cin * 3
    gain = (2.0 / (1.0 + 0.01 ** 2)) ** 0.5
    std = gain / (fan_in ** 0.5)
    w = std * jax.random.normal(kw, (Dm, Cin, 3), dtype=jnp.float32)

    out = token_embedding(x, w)
    jax.block_until_ready(out)

    ref = _reference(x, w)
    assert out.shape == (B, L, Dm), out.shape
    # bf16 matmul operands with f32 accumulation -> loosened tolerance.
    assert jnp.allclose(out, ref, atol=5e-2, rtol=5e-2), float(
        jnp.max(jnp.abs(out - ref)))

    print("KERNEL_OK")
</pallas_src>

<mosaic_0001>
module attributes {stable_mosaic.version = 11 : i64} {
  func.func @probe_kernel(%arg0: memref<2x16x128xbf16, #tpu.memory_space<vmem>>, %arg1: memref<2x16x128xbf16, #tpu.memory_space<vmem>>) attributes {dimension_semantics = [], scalar_prefetch = 0 : i64, scratch_operands = 0 : i64, tpu.core_type = #tpu.core_type<tc>} {
    %c0 = arith.constant 0 : index
    %c0_0 = arith.constant 0 : index
    %c0_1 = arith.constant 0 : index
    %0 = vector.load %arg0[%c0, %c0_0, %c0_1] : memref<2x16x128xbf16, #tpu.memory_space<vmem>>, vector<2x16x128xbf16>
    %c1_i32 = arith.constant 1 : i32
    %1 = tpu.dynamic_rotate %0 by %c1_i32 dim 1 : vector<2x16x128xbf16>, i32 -> vector<2x16x128xbf16>
    %c0_2 = arith.constant 0 : index
    %c0_3 = arith.constant 0 : index
    %c0_4 = arith.constant 0 : index
    %2 = vector.load %arg1[%c0_2, %c0_3, %c0_4] : memref<2x16x128xbf16, #tpu.memory_space<vmem>>, vector<2x16x128xbf16>
    tpu.vector_store %arg1[%c0_2, %c0_3, %c0_4], %1 {strides = array<i32>} : memref<2x16x128xbf16, #tpu.memory_space<vmem>>, vector<2x16x128xbf16>,
    return
  }
}

module attributes {stable_mosaic.version = 11 : i64} {
  func.func @kernel(%arg0: i32, %arg1: memref<4x128x64xbf16, #tpu.memory_space<vmem>>, %arg2: memref<192x128xbf16, #tpu.memory_space<vmem>>, %arg3: memref<4x128x128xf32, #tpu.memory_space<vmem>>) attributes {dimension_semantics = [#tpu.dimension_semantics<parallel>], iteration_bounds = array<i64: 2>, scalar_prefetch = 0 : i64, scratch_operands = 0 : i64, tpu.core_type = #tpu.core_type<tc>, window_params = [{transform_indices = @transform_0, window_bounds = array<i64: 4, 128, 64>}, {pipeline_mode = #tpu.pipeline_mode<synchronous>, transform_indices = @transform_1, window_bounds = array<i64: 192, 128>}, {transform_indices = @transform_2, window_bounds = array<i64: 4, 128, 128>}]} {
    %c0 = arith.constant 0 : index
    %c0_0 = arith.constant 0 : index
    %c0_1 = arith.constant 0 : index
    %0 = vector.load %arg1[%c0, %c0_0, %c0_1] : memref<4x128x64xbf16, #tpu.memory_space<vmem>>, vector<4x128x64xbf16>
    %1 = vector.extract_strided_slice %0 {offsets = [0, 127, 0], sizes = [4, 1, 64], strides = [1, 1, 1]} : vector<4x128x64xbf16> to vector<4x1x64xbf16>
    %2 = vector.extract_strided_slice %0 {offsets = [0, 0, 0], sizes = [4, 127, 64], strides = [1, 1, 1]} : vector<4x128x64xbf16> to vector<4x127x64xbf16>
    %3 = tpu.concatenate %1, %2 in 1 : vector<4x1x64xbf16>, vector<4x127x64xbf16> -> vector<4x128x64xbf16>
    %4 = vector.extract_strided_slice %0 {offsets = [0, 1, 0], sizes = [4, 127, 64], strides = [1, 1, 1]} : vector<4x128x64xbf16> to vector<4x127x64xbf16>
    %5 = vector.extract_strided_slice %0 {offsets = [0, 0, 0], sizes = [4, 1, 64], strides = [1, 1, 1]} : vector<4x128x64xbf16> to vector<4x1x64xbf16>
    %6 = tpu.concatenate %4, %5 in 1 : vector<4x127x64xbf16>, vector<4x1x64xbf16> -> vector<4x128x64xbf16>
    %7 = vector.shape_cast %3 : vector<4x128x64xbf16> to vector<512x64xbf16>
    %8 = vector.shape_cast %0 : vector<4x128x64xbf16> to vector<512x64xbf16>
    %9 = vector.shape_cast %6 : vector<4x128x64xbf16> to vector<512x64xbf16>
    %c0_2 = arith.constant 0 : index
    %c0_3 = arith.constant 0 : index
    %10 = vector.load %arg2[%c0_2, %c0_3] : memref<192x128xbf16, #tpu.memory_space<vmem>>, vector<64x128xbf16>
    %cst = arith.constant dense<0.000000e+00> : vector<512x128xf32>
    %11 = tpu.matmul %7, %10, %cst {dimension_numbers = #tpu.dot_dimension_numbers<[1], [0], [0], [1], [0, 0, 1, 1], [], []>} : vector<512x64xbf16>, vector<64x128xbf16>, vector<512x128xf32> -> vector<512x128xf32>
    %c64 = arith.constant 64 : index
    %c0_4 = arith.constant 0 : index
    %12 = vector.load %arg2[%c64, %c0_4] : memref<192x128xbf16, #tpu.memory_space<vmem>>, vector<64x128xbf16>
    %cst_5 = arith.constant dense<0.000000e+00> : vector<512x128xf32>
    %13 = tpu.matmul %8, %12, %cst_5 {dimension_numbers = #tpu.dot_dimension_numbers<[1], [0], [0], [1], [0, 0, 1, 1], [], []>} : vector<512x64xbf16>, vector<64x128xbf16>, vector<512x128xf32> -> vector<512x128xf32>
    %14 = arith.addf %11, %13 : vector<512x128xf32>
    %c128 = arith.constant 128 : index
    %c0_6 = arith.constant 0 : index
    %15 = vector.load %arg2[%c128, %c0_6] : memref<192x128xbf16, #tpu.memory_space<vmem>>, vector<64x128xbf16>
    %cst_7 = arith.constant dense<0.000000e+00> : vector<512x128xf32>
    %16 = tpu.matmul %9, %15, %cst_7 {dimension_numbers = #tpu.dot_dimension_numbers<[1], [0], [0], [1], [0, 0, 1, 1], [], []>} : vector<512x64xbf16>, vector<64x128xbf16>, vector<512x128xf32> -> vector<512x128xf32>
    %17 = arith.addf %14, %16 : vector<512x128xf32>
    %18 = vector.shape_cast %17 : vector<512x128xf32> to vector<4x128x128xf32>
    %c0_8 = arith.constant 0 : index
    %c0_9 = arith.constant 0 : index
    %c0_10 = arith.constant 0 : index
    %19 = vector.load %arg3[%c0_8, %c0_9, %c0_10] : memref<4x128x128xf32, #tpu.memory_space<vmem>>, vector<4x128x128xf32>
    tpu.vector_store %arg3[%c0_8, %c0_9, %c0_10], %18 {strides = array<i32>} : memref<4x128x128xf32, #tpu.memory_space<vmem>>, vector<4x128x128xf32>,
    return
  }
  func.func @transform_0(%arg0: i32) -> (i32, i32, i32) {
    %c0_i32 = arith.constant 0 : i32
    %c0_i32_0 = arith.constant 0 : i32
    %c0_i32_1 = arith.constant 0 : i32
    return %arg0, %c0_i32, %c0_i32_0 : i32, i32, i32
  }
  func.func @transform_1(%arg0: i32) -> (i32, i32) {
    %c0_i32 = arith.constant 0 : i32
    %c0_i32_0 = arith.constant 0 : i32
    %c0_i32_1 = arith.constant 0 : i32
    return %c0_i32, %c0_i32_0 : i32, i32
  }
  func.func @transform_2(%arg0: i32) -> (i32, i32, i32) {
    %c0_i32 = arith.constant 0 : i32
    %c0_i32_0 = arith.constant 0 : i32
    %c0_i32_1 = arith.constant 0 : i32
    return %arg0, %c0_i32, %c0_i32_0 : i32, i32, i32
  }
}

</mosaic_0001>

<llo_original>
// kernel: _token_embedding_impl.1
$region0: #{_token_embedding_impl.1}
  #allocation0 [shape = 'u32[]', space=smem, size = 0x4, offset = 0x4, fixed_abs, tag = 'smem constant byte address 0x4 - core index']
  #allocation1 [shape = 'u32[144,128]{1,0:T(1,128)}', space=vmem, size = 0x12000, scoped, tag = 'internal scratch']
  %s0 = inlined_call_operand.vmem [shape: bf16[8,128,64], index: 0, kind: input, shape index: {}]
  %s1 = inlined_call_operand.vmem [shape: bf16[192,128], index: 1, kind: input, shape index: {}]
  %s2 = inlined_call_operand.hbm [shape: f32[8,128,128], index: 2, kind: output, shape index: {}]
  %s3 = sld [smem:[#allocation0]]
  $region41: #{_token_embedding_impl.1} parent=0
    _
  %s5 = ssub.s32 1, %s3
  %s6 = scalar_select 0, %s5, %s3
  $region1: #{_token_embedding_impl.1} parent=0
    #allocation2 [shape = 'u8[524288]{0}', space=vmem, size = 0x80000, scoped, tag = 'output window, operand 0']
    #allocation3 [shape = 's32[2]{0}', space=sflag, size = 0x8, scoped, tag = 'scoped memory for _token_embedding_impl.1']
    %7 = vsyncpa [#allocation3], 0
    %s8 = scalar_lea.sflag [#allocation3], 1
    %9 = vsyncpa %s8, 0
    loop: start=0, step=1, limit=4
    $region2: #{_token_embedding_impl.1} parent=1 // loop_pre_header
      _
    $region3: #{_token_embedding_impl.1} parent=1 // loop_header
      %s11 = sphi 0, %s15
      %p12 = scmp.ge.s32.totalorder %s11, 4
      %s21 = sphi 0, %s23
      %s24 = sphi 0, %s21
      %s25 = sphi 0, %s24
      %s41 = sphi 0, %s25
      %s45 = sphi 0, %s45
      %s47 = sphi 0, %s45
      %s48 = sphi 0, %s47
      %s62 = sphi 0, %s48
      %s68 = sphi 0, %s70
      %s71 = sphi 0, %s68
      %s72 = sphi 0, %s71
      %s88 = sphi 0, %s72
    $region4: #{_token_embedding_impl.1} parent=1 // loop_header_branch
      %14 = sbr.rel (%p12) target = $region8
    $region5: #{_token_embedding_impl.1} parent=1 // loop_body
      %s16 = ssub.s32 %s11, 1
      %s17 = ssub.s32 %s11, 2
      %s18 = sadd.s32 %s11, 1
      %s19 = ssub.s32 %s11, %s18
      %p20 = scmp.eq.s32.totalorder %s19, 0
      %s22 = sadd.s32 %s21, 1
      %s23 = scalar_select %p20, %s21, %s22
      %p26 = pneg %p20
      %p27 = scmp.eq.s32.totalorder %s11, 1
      %p28 = por %p26, %p27
      %p29 = scmp.ne.s32.totalorder %s21, %s24
      %p30 = scmp.eq.s32.totalorder %s11, 0
      %p31 = por %p29, %p30
      %p32 = scmp.ne.s32.totalorder %s21, %s24
      %p33 = scmp.eq.s32.totalorder %s16, 1
      %p34 = por %p32, %p33
      %p35 = scmp.ne.s32.totalorder %s24, %s25
      %p36 = scmp.eq.s32.totalorder %s16, 0
      %p37 = por %p35, %p36
      %p38 = scmp.ne.s32.totalorder %s24, %s25
      %p39 = scmp.eq.s32.totalorder %s17, 1
      %p40 = por %p38, %p39
      %p42 = scmp.ne.s32.totalorder %s25, %s41
      %p43 = scmp.eq.s32.totalorder %s17, 0
      %p44 = por %p42, %p43
      %s46 = sadd.s32 %s45, 1
      %p49 = scmp.eq.s32.totalorder %s11, 1
      %p50 = scmp.ne.s32.totalorder %s45, %s47
      %p51 = scmp.eq.s32.totalorder %s11, 0
      %p52 = por %p50, %p51
      %p53 = scmp.ne.s32.totalorder %s45, %s47
      %p54 = scmp.eq.s32.totalorder %s16, 1
      %p55 = por %p53, %p54
      %p56 = scmp.ne.s32.totalorder %s47, %s48
      %p57 = scmp.eq.s32.totalorder %s16, 0
      %p58 = por %p56, %p57
      %p59 = scmp.ne.s32.totalorder %s47, %s48
      %p60 = scmp.eq.s32.totalorder %s17, 1
      %p61 = por %p59, %p60
      %p63 = scmp.ne.s32.totalorder %s48, %s62
      %p64 = scmp.eq.s32.totalorder %s17, 0
      %p65 = por %p63, %p64
      %s66 = ssub.s32 %s11, %s18
      %p67 = scmp.eq.s32.totalorder %s66, 0
      %s69 = sadd.s32 %s68, 1
      %s70 = scalar_select %p67, %s68, %s69
      %p73 = pneg %p67
      %p74 = scmp.eq.s32.totalorder %s11, 1
      %p75 = por %p73, %p74
      %p76 = scmp.ne.s32.totalorder %s68, %s71
      %p77 = scmp.eq.s32.totalorder %s11, 0
      %p78 = por %p76, %p77
      %p79 = scmp.ne.s32.totalorder %s68, %s71
      %p80 = scmp.eq.s32.totalorder %s16, 1
      %p81 = por %p79, %p80
      %p82 = scmp.ne.s32.totalorder %s71, %s72
      %p83 = scmp.eq.s32.totalorder %s16, 0
      %p84 = por %p82, %p83
      %p85 = scmp.ne.s32.totalorder %s71, %s72
      %p86 = scmp.eq.s32.totalorder %s17, 1
      %p87 = por %p85, %p86
      %p89 = scmp.ne.s32.totalorder %s72, %s88
      %p90 = scmp.eq.s32.totalorder %s17, 0
      %p91 = por %p89, %p90
      %p92 = scmp.le.s32.totalorder 1, %s11
      %p93 = scmp.lt.s32.totalorder %s11, 3
      %p94 = pnand %p92, %p93
      %p95 = pneg %p94
      // Predicated region
      $region9: #{_token_embedding_impl.1} parent=5 // pred_check
        _
      $region10: #{_token_embedding_impl.1} parent=5 // pred_check_branch
        %97 = sbr.rel (%p94) target = $region12
      $region11: #{_token_embedding_impl.1} parent=5 // pred_region
        %s98 = ssub.s32 %s11, 1
        // Predicated region
        $region13: #{_token_embedding_impl.1} parent=11 // pred_check
          %p99 = pneg %p58
        $region14: #{_token_embedding_impl.1} parent=11 // pred_check_branch
          %101 = sbr.rel (%p99) target = $region16
        $region15: #{_token_embedding_impl.1} parent=11 // pred_region
          _
        $region16: #{_token_embedding_impl.1} parent=11 // pred_fallthru
          _
      $region12: #{_token_embedding_impl.1} parent=5 // pred_fallthru
        _
      %p102 = scmp.lt.s32.totalorder %s11, 2
      // Predicated region
      $region17: #{_token_embedding_impl.1} parent=5 // pred_check
        %p103 = pneg %p102
      $region18: #{_token_embedding_impl.1} parent=5 // pred_check_branch
        %105 = sbr.rel (%p103) target = $region20
      $region19: #{_token_embedding_impl.1} parent=5 // pred_region
        // Predicated region
        $region21: #{_token_embedding_impl.1} parent=19 // pred_check
          %p106 = pneg %p31
        $region22: #{_token_embedding_impl.1} parent=19 // pred_check_branch
          %108 = sbr.rel (%p106) target = $region24
        $region23: #{_token_embedding_impl.1} parent=19 // pred_region
          %s109 = smul.u32 4, %s11
          %p110 = scmp.lt.s32.totalorder %s109, 7
          %s111 = scalar_select %p110, %s109, 7
          %s112 = smul.addr %s111, 16
          %s113 = smul.addr %s112, 4
          %s114 = scalar_lea.vmem %s0, %s113
          %s115 = smul.u32 4, %s11
        $region24: #{_token_embedding_impl.1} parent=19 // pred_fallthru
          _
      $region20: #{_token_embedding_impl.1} parent=5 // pred_fallthru
        _
      %p116 = scmp.le.s32.totalorder 1, %s11
      %p117 = scmp.lt.s32.totalorder %s11, 3
      %p118 = pnand %p116, %p117
      %p119 = pneg %p118
      // Predicated region
      $region25: #{_token_embedding_impl.1} parent=5 // pred_check
        _
      $region26: #{_token_embedding_impl.1} parent=5 // pred_check_branch
        %121 = sbr.rel (%p118) target = $region28
      $region27: #{_token_embedding_impl.1} parent=5 // pred_region
        %s122 = ssub.s32 %s11, 1
        %s123 = smul.u32 4, %s16
        %p124 = scmp.lt.s32.totalorder %s123, 7
        %s125 = scalar_select %p124, %s123, 7
        %s126 = smul.addr %s125, 16
        %s127 = smul.addr %s126, 4
        %s128 = scalar_lea.vmem %s0, %s127
        %p129 = pneg %p37
        %p130 = pneg %p34
        %p131 = pneg %p58
        %p132 = pneg %p55
        %p133 = pneg %p84
        %p134 = pneg %p81
        %s135 = sand.u32 %s71, 1
        %s136 = scalar_lea.sflag [#allocation3], %s135
        %s137 = sand.u32 %s71, 1
        %s138 = smul.addr %s137, 512
        %s139 = scalar_lea.vmem [#allocation2], %s138
        %s140 = smul.u32 4, %s16
        %p141 = scmp.lt.s32.totalorder %s140, 7
        %s142 = scalar_select %p141, %s140, 7
        %s143 = smul.addr %s142, 16
        %s144 = smul.addr %s143, 4
        %s145 = scalar_lea.vmem %s0, %s144
        %s146 = smul.u32 4, %s16
        %s147 = smul.u32 4, %s16
        %v149 = vld [vmem:[%s145] sm:$0xf]
        %v150 = vld [vmem:[%s145 + $0x4] sm:$0xf]
        %v151 = vld [vmem:[%s145 + $0x8] sm:$0xf]
        %v152 = vld [vmem:[%s145 + $0xc] sm:$0xf]
        %v153 = vld [vmem:[%s145 + $0x10] sm:$0xf]
        %v154 = vld [vmem:[%s145 + $0x14] sm:$0xf]
        %v155 = vld [vmem:[%s145 + $0x18] sm:$0xf]
        %v156 = vld [vmem:[%s145 + $0x1c] sm:$0xf]
        %v157 = vld [vmem:[%s145 + $0x20] sm:$0xf]
        %v158 = vld [vmem:[%s145 + $0x24] sm:$0xf]
        %v159 = vld [vmem:[%s145 + $0x28] sm:$0xf]
        %v160 = vld [vmem:[%s145 + $0x2c] sm:$0xf]
        %v161 = vld [vmem:[%s145 + $0x30] sm:$0xf]
        %v162 = vld [vmem:[%s145 + $0x34] sm:$0xf]
        %v163 = vld [vmem:[%s145 + $0x38] sm:$0xf]
        %v164 = vld [vmem:[%s145 + $0x3c] sm:$0xf]
        %v165 = vld [vmem:[%s145 + $0x40] sm:$0xf]
        %v166 = vld [vmem:[%s145 + $0x44] sm:$0xf]
        %v167 = vld [vmem:[%s145 + $0x48] sm:$0xf]
        %v168 = vld [vmem:[%s145 + $0x4c] sm:$0xf]
        %v169 = vld [vmem:[%s145 + $0x50] sm:$0xf]
        %v170 = vld [vmem:[%s145 + $0x54] sm:$0xf]
        %v171 = vld [vmem:[%s145 + $0x58] sm:$0xf]
        %v172 = vld [vmem:[%s145 + $0x5c] sm:$0xf]
        %v173 = vld [vmem:[%s145 + $0x60] sm:$0xf]
        %v174 = vld [vmem:[%s145 + $0x64] sm:$0xf]
        %v175 = vld [vmem:[%s145 + $0x68] sm:$0xf]
        %v176 = vld [vmem:[%s145 + $0x6c] sm:$0xf]
        %v177 = vld [vmem:[%s145 + $0x70] sm:$0xf]
        %v178 = vld [vmem:[%s145 + $0x74] sm:$0xf]
        %v179 = vld [vmem:[%s145 + $0x78] sm:$0xf]
        %v180 = vld [vmem:[%s145 + $0x7c] sm:$0xf]
        %v181 = vld [vmem:[%s145 + $0x80] sm:$0xf]
        %v182 = vld [vmem:[%s145 + $0x84] sm:$0xf]
        %v183 = vld [vmem:[%s145 + $0x88] sm:$0xf]
        %v184 = vld [vmem:[%s145 + $0x8c] sm:$0xf]
        %v185 = vld [vmem:[%s145 + $0x90] sm:$0xf]
        %v186 = vld [vmem:[%s145 + $0x94] sm:$0xf]
        %v187 = vld [vmem:[%s145 + $0x98] sm:$0xf]
        %v188 = vld [vmem:[%s145 + $0x9c] sm:$0xf]
        %v189 = vld [vmem:[%s145 + $0xa0] sm:$0xf]
        %v190 = vld [vmem:[%s145 + $0xa4] sm:$0xf]
        %v191 = vld [vmem:[%s145 + $0xa8] sm:$0xf]
        %v192 = vld [vmem:[%s145 + $0xac] sm:$0xf]
        %v193 = vld [vmem:[%s145 + $0xb0] sm:$0xf]
        %v194 = vld [vmem:[%s145 + $0xb4] sm:$0xf]
        %v195 = vld [vmem:[%s145 + $0xb8] sm:$0xf]
        %v196 = vld [vmem:[%s145 + $0xbc] sm:$0xf]
        %v197 = vld [vmem:[%s145 + $0xc0] sm:$0xf]
        %v198 = vld [vmem:[%s145 + $0xc4] sm:$0xf]
        %v199 = vld [vmem:[%s145 + $0xc8] sm:$0xf]
        %v200 = vld [vmem:[%s145 + $0xcc] sm:$0xf]
        %v201 = vld [vmem:[%s145 + $0xd0] sm:$0xf]
        %v202 = vld [vmem:[%s145 + $0xd4] sm:$0xf]
        %v203 = vld [vmem:[%s145 + $0xd8] sm:$0xf]
        %v204 = vld [vmem:[%s145 + $0xdc] sm:$0xf]
        %v205 = vld [vmem:[%s145 + $0xe0] sm:$0xf]
        %v206 = vld [vmem:[%s145 + $0xe4] sm:$0xf]
        %v207 = vld [vmem:[%s145 + $0xe8] sm:$0xf]
        %v208 = vld [vmem:[%s145 + $0xec] sm:$0xf]
        %v209 = vld [vmem:[%s145 + $0xf0] sm:$0xf]
        %v210 = vld [vmem:[%s145 + $0xf4] sm:$0xf]
        %v211 = vld [vmem:[%s145 + $0xf8] sm:$0xf]
        %v212 = vld [vmem:[%s145 + $0xfc] sm:$0xf]
        %v217 = vunpack.c.l.b16 %v164
        %v218 = vunpack.c.l.b16 %v180
        %v219 = vunpack.c.l.b16 %v196
        %v220 = vunpack.c.l.b16 %v212
        %v221 = vpack.c.b16 %v217, %v217
        %v222 = vpack.c.b16 %v218, %v218
        %v223 = vpack.c.b16 %v219, %v219
        %v224 = vpack.c.b16 %v220, %v220
        %v226 = vshrl.u32 %v221, 16
        %v228 = vrot.slane %v226, 3
        %v230 = vshrl.u32 %v222, 16
        %v232 = vrot.slane %v230, 3
        %v234 = vshrl.u32 %v223, 16
        %v236 = vrot.slane %v234, 3
        %v238 = vshrl.u32 %v224, 16
        %v240 = vrot.slane %v238, 3
        %v305 = vunpack.c.l.b16 %v149
        %v306 = vunpack.c.l.b16 %v150
        %v307 = vunpack.c.l.b16 %v151
        %v308 = vunpack.c.l.b16 %v152
        %v309 = vunpack.c.l.b16 %v153
        %v310 = vunpack.c.l.b16 %v154
        %v311 = vunpack.c.l.b16 %v155
        %v312 = vunpack.c.l.b16 %v156
        %v313 = vunpack.c.l.b16 %v157
        %v314 = vunpack.c.l.b16 %v158
        %v315 = vunpack.c.l.b16 %v159
        %v316 = vunpack.c.l.b16 %v160
        %v317 = vunpack.c.l.b16 %v161
        %v318 = vunpack.c.l.b16 %v162
        %v319 = vunpack.c.l.b16 %v163
        %v320 = vunpack.c.l.b16 %v165
        %v321 = vunpack.c.l.b16 %v166
        %v322 = vunpack.c.l.b16 %v167
        %v323 = vunpack.c.l.b16 %v168
        %v324 = vunpack.c.l.b16 %v169
        %v325 = vunpack.c.l.b16 %v170
        %v326 = vunpack.c.l.b16 %v171
        %v327 = vunpack.c.l.b16 %v172
        %v328 = vunpack.c.l.b16 %v173
        %v329 = vunpack.c.l.b16 %v174
        %v330 = vunpack.c.l.b16 %v175
        %v331 = vunpack.c.l.b16 %v176
        %v332 = vunpack.c.l.b16 %v177
        %v333 = vunpack.c.l.b16 %v178
        %v334 = vunpack.c.l.b16 %v179
        %v335 = vunpack.c.l.b16 %v181
        %v336 = vunpack.c.l.b16 %v182
        %v337 = vunpack.c.l.b16 %v183
        %v338 = vunpack.c.l.b16 %v184
        %v339 = vunpack.c.l.b16 %v185
        %v340 = vunpack.c.l.b16 %v186
        %v341 = vunpack.c.l.b16 %v187
        %v342 = vunpack.c.l.b16 %v188
        %v343 = vunpack.c.l.b16 %v189
        %v344 = vunpack.c.l.b16 %v190
        %v345 = vunpack.c.l.b16 %v191
        %v346 = vunpack.c.l.b16 %v192
        %v347 = vunpack.c.l.b16 %v193
        %v348 = vunpack.c.l.b16 %v194
        %v349 = vunpack.c.l.b16 %v195
        %v350 = vunpack.c.l.b16 %v197
        %v351 = vunpack.c.l.b16 %v198
        %v352 = vunpack.c.l.b16 %v199
        %v353 = vunpack.c.l.b16 %v200
        %v354 = vunpack.c.l.b16 %v201
        %v355 = vunpack.c.l.b16 %v202
        %v356 = vunpack.c.l.b16 %v203
        %v357 = vunpack.c.l.b16 %v204
        %v358 = vunpack.c.l.b16 %v205
        %v359 = vunpack.c.l.b16 %v206
        %v360 = vunpack.c.l.b16 %v207
        %v361 = vunpack.c.l.b16 %v208
        %v362 = vunpack.c.l.b16 %v209
        %v363 = vunpack.c.l.b16 %v210
        %v364 = vunpack.c.l.b16 %v211
        %v365 = vpack.c.b16 %v306, %v305
        %v366 = vpack.c.b16 %v308, %v307
        %v367 = vpack.c.b16 %v310, %v309
        %v368 = vpack.c.b16 %v312, %v311
        %v369 = vpack.c.b16 %v314, %v313
        %v370 = vpack.c.b16 %v316, %v315
        %v371 = vpack.c.b16 %v318, %v317
        %v372 = vpack.c.b16 %v217, %v319
        %v373 = vpack.c.b16 %v321, %v320
        %v374 = vpack.c.b16 %v323, %v322
        %v375 = vpack.c.b16 %v325, %v324
        %v376 = vpack.c.b16 %v327, %v326
        %v377 = vpack.c.b16 %v329, %v328
        %v378 = vpack.c.b16 %v331, %v330
        %v379 = vpack.c.b16 %v333, %v332
        %v380 = vpack.c.b16 %v218, %v334
        %v381 = vpack.c.b16 %v336, %v335
        %v382 = vpack.c.b16 %v338, %v337
        %v383 = vpack.c.b16 %v340, %v339
        %v384 = vpack.c.b16 %v342, %v341
        %v385 = vpack.c.b16 %v344, %v343
        %v386 = vpack.c.b16 %v346, %v345
        %v387 = vpack.c.b16 %v348, %v347
        %v388 = vpack.c.b16 %v219, %v349
        %v389 = vpack.c.b16 %v351, %v350
        %v390 = vpack.c.b16 %v353, %v352
        %v391 = vpack.c.b16 %v355, %v354
        %v392 = vpack.c.b16 %v357, %v356
        %v393 = vpack.c.b16 %v359, %v358
        %v394 = vpack.c.b16 %v361, %v360
        %v395 = vpack.c.b16 %v363, %v362
        %v396 = vpack.c.b16 %v220, %v364
        %vm397 = vsmask.f32 256
        %v399 = vshrl.u32 %v365, 16
        %v401 = vrot.slane %v399, 7
        %v402 = vshll.u32 %v365, 16
        %v404 = vor.u32 %v401, %v402
        %v406 = vshrl.u32 %v366, 16
        %v408 = vrot.slane %v406, 7
        %v409 = vshll.u32 %v366, 16
        %v411 = vor.u32 %v408, %v409
        %v412 = vsel %vm397, %v401, %v411
        %v414 = vshrl.u32 %v367, 16
        %v416 = vrot.slane %v414, 7
        %v417 = vshll.u32 %v367, 16
        %v419 = vor.u32 %v416, %v417
        %v420 = vsel %vm397, %v408, %v419
        %v422 = vshrl.u32 %v368, 16
        %v424 = vrot.slane %v422, 7
        %v425 = vshll.u32 %v368, 16
        %v427 = vor.u32 %v424, %v425
        %v428 = vsel %vm397, %v416, %v427
        %v430 = vshrl.u32 %v369, 16
        %v432 = vrot.slane %v430, 7
        %v433 = vshll.u32 %v369, 16
        %v435 = vor.u32 %v432, %v433
        %v436 = vsel %vm397, %v424, %v435
        %v438 = vshrl.u32 %v370, 16
        %v440 = vrot.slane %v438, 7
        %v441 = vshll.u32 %v370, 16
        %v443 = vor.u32 %v440, %v441
        %v444 = vsel %vm397, %v432, %v443
        %v446 = vshrl.u32 %v371, 16
        %v448 = vrot.slane %v446, 7
        %v449 = vshll.u32 %v371, 16
        %v451 = vor.u32 %v448, %v449
        %v452 = vsel %vm397, %v440, %v451
        %v454 = vshrl.u32 %v372, 16
        %v456 = vrot.slane %v454, 7
        %v457 = vshll.u32 %v372, 16
        %v459 = vor.u32 %v456, %v457
        %v460 = vsel %vm397, %v448, %v459
        %v462 = vshrl.u32 %v373, 16
        %v464 = vrot.slane %v462, 7
        %v465 = vshll.u32 %v373, 16
        %v467 = vor.u32 %v464, %v465
        %v469 = vshrl.u32 %v374, 16
        %v471 = vrot.slane %v469, 7
        %v472 = vshll.u32 %v374, 16
        %v474 = vor.u32 %v471, %v472
        %v475 = vsel %vm397, %v464, %v474
        %v477 = vshrl.u32 %v375, 16
        %v479 = vrot.slane %v477, 7
        %v480 = vshll.u32 %v375, 16
        %v482 = vor.u32 %v479, %v480
        %v483 = vsel %vm397, %v471, %v482
        %v485 = vshrl.u32 %v376, 16
        %v487 = vrot.slane %v485, 7
        %v488 = vshll.u32 %v376, 16
        %v490 = vor.u32 %v487, %v488
        %v491 = vsel %vm397, %v479, %v490
        %v493 = vshrl.u32 %v377, 16
        %v495 = vrot.slane %v493, 7
        %v496 = vshll.u32 %v377, 16
        %v498 = vor.u32 %v495, %v496
        %v499 = vsel %vm397, %v487, %v498
        %v501 = vshrl.u32 %v378, 16
        %v503 = vrot.slane %v501, 7
        %v504 = vshll.u32 %v378, 16
        %v506 = vor.u32 %v503, %v504
        %v507 = vsel %vm397, %v495, %v506
        %v509 = vshrl.u32 %v379, 16
        %v511 = vrot.slane %v509, 7
        %v512 = vshll.u32 %v379, 16
        %v514 = vor.u32 %v511, %v512
        %v515 = vsel %vm397, %v503, %v514
        %v517 = vshrl.u32 %v380, 16
        %v519 = vrot.slane %v517, 7
        %v520 = vshll.u32 %v380, 16
        %v522 = vor.u32 %v519, %v520
        %v523 = vsel %vm397, %v511, %v522
        %v525 = vshrl.u32 %v381, 16
        %v527 = vrot.slane %v525, 7
        %v528 = vshll.u32 %v381, 16
        %v530 = vor.u32 %v527, %v528
        %v532 = vshrl.u32 %v382, 16
        %v534 = vrot.slane %v532, 7
        %v535 = vshll.u32 %v382, 16
        %v537 = vor.u32 %v534, %v535
        %v538 = vsel %vm397, %v527, %v537
        %v540 = vshrl.u32 %v383, 16
        %v542 = vrot.slane %v540, 7
        %v543 = vshll.u32 %v383, 16
        %v545 = vor.u32 %v542, %v543
        %v546 = vsel %vm397, %v534, %v545
        %v548 = vshrl.u32 %v384, 16
        %v550 = vrot.slane %v548, 7
        %v551 = vshll.u32 %v384, 16
        %v553 = vor.u32 %v550, %v551
        %v554 = vsel %vm397, %v542, %v553
        %v556 = vshrl.u32 %v385, 16
        %v558 = vrot.slane %v556, 7
        %v559 = vshll.u32 %v385, 16
        %v561 = vor.u32 %v558, %v559
        %v562 = vsel %vm397, %v550, %v561
        %v564 = vshrl.u32 %v386, 16
        %v566 = vrot.slane %v564, 7
        %v567 = vshll.u32 %v386, 16
        %v569 = vor.u32 %v566, %v567
        %v570 = vsel %vm397, %v558, %v569
        %v572 = vshrl.u32 %v387, 16
        %v574 = vrot.slane %v572, 7
        %v575 = vshll.u32 %v387, 16
        %v577 = vor.u32 %v574, %v575
        %v578 = vsel %vm397, %v566, %v577
        %v580 = vshrl.u32 %v388, 16
        %v582 = vrot.slane %v580, 7
        %v583 = vshll.u32 %v388, 16
        %v585 = vor.u32 %v582, %v583
        %v586 = vsel %vm397, %v574, %v585
        %v588 = vshrl.u32 %v389, 16
        %v590 = vrot.slane %v588, 7
        %v591 = vshll.u32 %v389, 16
        %v593 = vor.u32 %v590, %v591
        %v595 = vshrl.u32 %v390, 16
        %v597 = vrot.slane %v595, 7
        %v598 = vshll.u32 %v390, 16
        %v600 = vor.u32 %v597, %v598
        %v601 = vsel %vm397, %v590, %v600
        %v603 = vshrl.u32 %v391, 16
        %v605 = vrot.slane %v603, 7
        %v606 = vshll.u32 %v391, 16
        %v608 = vor.u32 %v605, %v606
        %v609 = vsel %vm397, %v597, %v608
        %v611 = vshrl.u32 %v392, 16
        %v613 = vrot.slane %v611, 7
        %v614 = vshll.u32 %v392, 16
        %v616 = vor.u32 %v613, %v614
        %v617 = vsel %vm397, %v605, %v616
        %v619 = vshrl.u32 %v393, 16
        %v621 = vrot.slane %v619, 7
        %v622 = vshll.u32 %v393, 16
        %v624 = vor.u32 %v621, %v622
        %v625 = vsel %vm397, %v613, %v624
        %v627 = vshrl.u32 %v394, 16
        %v629 = vrot.slane %v627, 7
        %v630 = vshll.u32 %v394, 16
        %v632 = vor.u32 %v629, %v630
        %v633 = vsel %vm397, %v621, %v632
        %v635 = vshrl.u32 %v395, 16
        %v637 = vrot.slane %v635, 7
        %v638 = vshll.u32 %v395, 16
        %v640 = vor.u32 %v637, %v638
        %v641 = vsel %vm397, %v629, %v640
        %v643 = vshrl.u32 %v396, 16
        %v645 = vrot.slane %v643, 7
        %v646 = vshll.u32 %v396, 16
        %v648 = vor.u32 %v645, %v646
        %v649 = vsel %vm397, %v637, %v648
        %vm654 = vcmask 1040384
        %vm655 = vmand %vm654, %vm397
        %v656 = vsel %vm655, %v228, %v404
        %v657 = vsel %vm655, %v232, %v467
        %v658 = vsel %vm655, %v236, %v530
        %v659 = vsel %vm655, %v240, %v593
        %vm660 = vsmask.f32 7424
        %v661 = vrot.slane %v402, 1
        %v662 = vor.u32 %v399, %v661
        %v663 = vrot.slane %v409, 1
        %v664 = vsel %vm660, %v662, %v663
        %v665 = vor.u32 %v406, %v663
        %v666 = vrot.slane %v417, 1
        %v667 = vsel %vm660, %v665, %v666
        %v668 = vor.u32 %v414, %v666
        %v669 = vrot.slane %v425, 1
        %v670 = vsel %vm660, %v668, %v669
        %v671 = vor.u32 %v422, %v669
        %v672 = vrot.slane %v433, 1
        %v673 = vsel %vm660, %v671, %v672
        %v674 = vor.u32 %v430, %v672
        %v675 = vrot.slane %v441, 1
        %v676 = vsel %vm660, %v674, %v675
        %v677 = vor.u32 %v438, %v675
        %v678 = vrot.slane %v449, 1
        %v679 = vsel %vm660, %v677, %v678
        %v680 = vor.u32 %v446, %v678
        %v681 = vrot.slane %v457, 1
        %v682 = vsel %vm660, %v680, %v681
        %v683 = vor.u32 %v454, %v681
        %v684 = vrot.slane %v465, 1
        %v685 = vor.u32 %v462, %v684
        %v686 = vrot.slane %v472, 1
        %v687 = vsel %vm660, %v685, %v686
        %v688 = vor.u32 %v469, %v686
        %v689 = vrot.slane %v480, 1
        %v690 = vsel %vm660, %v688, %v689
        %v691 = vor.u32 %v477, %v689
        %v692 = vrot.slane %v488, 1
        %v693 = vsel %vm660, %v691, %v692
        %v694 = vor.u32 %v485, %v692
        %v695 = vrot.slane %v496, 1
        %v696 = vsel %vm660, %v694, %v695
        %v697 = vor.u32 %v493, %v695
        %v698 = vrot.slane %v504, 1
        %v699 = vsel %vm660, %v697, %v698
        %v700 = vor.u32 %v501, %v698
        %v701 = vrot.slane %v512, 1
        %v702 = vsel %vm660, %v700, %v701
        %v703 = vor.u32 %v509, %v701
        %v704 = vrot.slane %v520, 1
        %v705 = vsel %vm660, %v703, %v704
        %v706 = vor.u32 %v517, %v704
        %v707 = vrot.slane %v528, 1
        %v708 = vor.u32 %v525, %v707
        %v709 = vrot.slane %v535, 1
        %v710 = vsel %vm660, %v708, %v709
        %v711 = vor.u32 %v532, %v709
        %v712 = vrot.slane %v543, 1
        %v713 = vsel %vm660, %v711, %v712
        %v714 = vor.u32 %v540, %v712
        %v715 = vrot.slane %v551, 1
        %v716 = vsel %vm660, %v714, %v715
        %v717 = vor.u32 %v548, %v715
        %v718 = vrot.slane %v559, 1
        %v719 = vsel %vm660, %v717, %v718
        %v720 = vor.u32 %v556, %v718
        %v721 = vrot.slane %v567, 1
        %v722 = vsel %vm660, %v720, %v721
        %v723 = vor.u32 %v564, %v721
        %v724 = vrot.slane %v575, 1
        %v725 = vsel %vm660, %v723, %v724
        %v726 = vor.u32 %v572, %v724
        %v727 = vrot.slane %v583, 1
        %v728 = vsel %vm660, %v726, %v727
        %v729 = vor.u32 %v580, %v727
        %v730 = vrot.slane %v591, 1
        %v731 = vor.u32 %v588, %v730
        %v732 = vrot.slane %v598, 1
        %v733 = vsel %vm660, %v731, %v732
        %v734 = vor.u32 %v595, %v732
        %v735 = vrot.slane %v606, 1
        %v736 = vsel %vm660, %v734, %v735
        %v737 = vor.u32 %v603, %v735
        %v738 = vrot.slane %v614, 1
        %v739 = vsel %vm660, %v737, %v738
        %v740 = vor.u32 %v611, %v738
        %v741 = vrot.slane %v622, 1
        %v742 = vsel %vm660, %v740, %v741
        %v743 = vor.u32 %v619, %v741
        %v744 = vrot.slane %v630, 1
        %v745 = vsel %vm660, %v743, %v744
        %v746 = vor.u32 %v627, %v744
        %v747 = vrot.slane %v638, 1
        %v748 = vsel %vm660, %v746, %v747
        %v749 = vor.u32 %v635, %v747
        %v750 = vrot.slane %v646, 1
        %v751 = vsel %vm660, %v749, %v750
        %v752 = vor.u32 %v643, %v750
        %v757 = vpack.c.b16 %v305, %v305
        %v758 = vpack.c.b16 %v320, %v320
        %v759 = vpack.c.b16 %v335, %v335
        %v760 = vpack.c.b16 %v350, %v350
        %v762 = vshll.u32 %v757, 16
        %v764 = vrot.slane %v762, 1
        %v766 = vshll.u32 %v758, 16
        %v768 = vrot.slane %v766, 1
        %v770 = vshll.u32 %v759, 16
        %v772 = vrot.slane %v770, 1
        %v774 = vshll.u32 %v760, 16
        %v776 = vrot.slane %v774, 1
        %vm781 = vcmask 1047552
        %vm782 = vmand %vm781, %vm660
        %v783 = vsel %vm782, %v683, %v764
        %v784 = vsel %vm782, %v706, %v768
        %v785 = vsel %vm782, %v729, %v772
        %v786 = vsel %vm782, %v752, %v776
        %v787 = vld [vmem:[%s1] sm:$0xf]
        %v788 = vld [vmem:[%s1 + $0x4] sm:$0xf]
        %v789 = vld [vmem:[%s1 + $0x8] sm:$0xf]
        %v790 = vld [vmem:[%s1 + $0xc] sm:$0xf]
        %v791 = vld [vmem:[%s1 + $0x10] sm:$0xf]
        %v792 = vld [vmem:[%s1 + $0x14] sm:$0xf]
        %v793 = vld [vmem:[%s1 + $0x18] sm:$0xf]
        %v794 = vld [vmem:[%s1 + $0x1c] sm:$0xf]
        %v795 = vld [vmem:[%s1 + $0x20] sm:$0xf]
        %v796 = vld [vmem:[%s1 + $0x24] sm:$0xf]
        %v797 = vld [vmem:[%s1 + $0x28] sm:$0xf]
        %v798 = vld [vmem:[%s1 + $0x2c] sm:$0xf]
        %v799 = vld [vmem:[%s1 + $0x30] sm:$0xf]
        %v800 = vld [vmem:[%s1 + $0x34] sm:$0xf]
        %v801 = vld [vmem:[%s1 + $0x38] sm:$0xf]
        %v802 = vld [vmem:[%s1 + $0x3c] sm:$0xf]
        %v811 = vunpack.c.l.b16 %v795
        %v812 = vunpack.c.l.b16 %v796
        %v813 = vunpack.c.l.b16 %v797
        %v814 = vunpack.c.l.b16 %v798
        %v815 = vunpack.c.l.b16 %v799
        %v816 = vunpack.c.l.b16 %v800
        %v817 = vunpack.c.l.b16 %v801
        %v818 = vunpack.c.l.b16 %v802
        %v819 = vpack.c.b16 %v812, %v811
        %v820 = vpack.c.b16 %v814, %v813
        %v821 = vpack.c.b16 %v816, %v815
        %v822 = vpack.c.b16 %v818, %v817
        %vm827 = vcmask 523264
        %v828 = vsel %vm827, %v365, 0
        %v830 = vsel %vm827, %v366, 0
        %v832 = vsel %vm827, %v367, 0
        %v834 = vsel %vm827, %v368, 0
        %v836 = vsel %vm827, %v369, 0
        %v838 = vsel %vm827, %v370, 0
        %v840 = vsel %vm827, %v371, 0
        %v842 = vsel %vm827, %v372, 0
        %v844 = vsel %vm827, %v373, 0
        %v846 = vsel %vm827, %v374, 0
        %v848 = vsel %vm827, %v375, 0
        %v850 = vsel %vm827, %v376, 0
        %v852 = vsel %vm827, %v377, 0
        %v854 = vsel %vm827, %v378, 0
        %v856 = vsel %vm827, %v379, 0
        %v858 = vsel %vm827, %v380, 0
        %v860 = vsel %vm827, %v381, 0
        %v862 = vsel %vm827, %v382, 0
        %v864 = vsel %vm827, %v383, 0
        %v866 = vsel %vm827, %v384, 0
        %v868 = vsel %vm827, %v385, 0
        %v870 = vsel %vm827, %v386, 0
        %v872 = vsel %vm827, %v387, 0
        %v874 = vsel %vm827, %v388, 0
        %v876 = vsel %vm827, %v389, 0
        %v878 = vsel %vm827, %v390, 0
        %v880 = vsel %vm827, %v391, 0
        %v882 = vsel %vm827, %v392, 0
        %v884 = vsel %vm827, %v393, 0
        %v886 = vsel %vm827, %v394, 0
        %v888 = vsel %vm827, %v395, 0
        %v890 = vsel %vm827, %v396, 0
        %892 = vmatprep.subr.bf16.mxu0 0
        %893 = vmatpush1.bf16.msra.mxu0 0
        %894 = vmatprep.subr.bf16.mxu0 0
        %895 = vmatpush1.bf16.msra.mxu0 0
        %896 = vmatprep.subr.bf16.mxu0 0
        %897 = vmatpush1.bf16.msra.mxu0 0
        %898 = vmatprep.subr.bf16.mxu0 0
        %899 = vmatpush1.bf16.msra.mxu0 0
        %900 = vmatprep.subr.bf16.mxu0 0
        %901 = vmatpush1.bf16.msra.mxu0 %v822
        %902 = vmatprep.subr.bf16.mxu0 0
        %903 = vmatpush1.bf16.msra.mxu0 %v821
        %904 = vmatprep.subr.bf16.mxu0 0
        %905 = vmatpush1.bf16.msra.mxu0 %v820
        %906 = vmatprep.subr.bf16.mxu0 0
        %907 = vmatpush1.bf16.msra.mxu0 %v819
        %908 = vmatprep.subr.bf16.mxu0 0
        %909 = vmatpush2.bf16.msra.mxu0 0
        %910 = vmatprep.subr.bf16.mxu0 0
        %911 = vmatpush2.bf16.msra.mxu0 0
        %912 = vmatprep.subr.bf16.mxu0 0
        %913 = vmatpush2.bf16.msra.mxu0 0
        %914 = vmatprep.subr.bf16.mxu0 0
        %915 = vmatpush2.bf16.msra.mxu0 0
        %916 = vmatprep.subr.bf16.mxu0 0
        %917 = vmatpush2.bf16.msra.mxu0 0
        %918 = vmatprep.subr.bf16.mxu0 0
        %919 = vmatpush2.bf16.msra.mxu0 0
        %920 = vmatprep.subr.bf16.mxu0 0
        %921 = vmatpush2.bf16.msra.mxu0 0
        %922 = vmatprep.subr.bf16.mxu0 0
        %923 = vmatpush2.bf16.msra.mxu0 0
        %924 = vmatprep.mubr.bf16.mxu0 0
        %925 = vmatmul.mubr.bf16.gmra.mxu0 %v828
        %v926 = vpop.f32.mrf.mxu0
        %v927 = vadd.f32 0.0, %v926
        %v928 = vpop.f32.mrf.mxu0
        %v929 = vpop.f32.mrf.mxu0
        %v930 = vadd.f32 0.0, %v929
        %v931 = vpop.f32.mrf.mxu0
        %932 = vmatprep.mubr.bf16.mxu0 0
        %933 = vmatmul.mubr.bf16.gmra.mxu0 %v830
        %v934 = vpop.f32.mrf.mxu0
        %v935 = vadd.f32 0.0, %v934
        %v936 = vpop.f32.mrf.mxu0
        %v937 = vpop.f32.mrf.mxu0
        %v938 = vadd.f32 0.0, %v937
        %v939 = vpop.f32.mrf.mxu0
        %940 = vmatprep.mubr.bf16.mxu0 0
        %941 = vmatmul.mubr.bf16.gmra.mxu0 %v832
        %v942 = vpop.f32.mrf.mxu0
        %v943 = vadd.f32 0.0, %v942
        %v944 = vpop.f32.mrf.mxu0
        %v945 = vpop.f32.mrf.mxu0
        %v946 = vadd.f32 0.0, %v945
        %v947 = vpop.f32.mrf.mxu0
        %948 = vmatprep.mubr.bf16.mxu0 0
        %949 = vmatmul.mubr.bf16.gmra.mxu0 %v834
        %v950 = vpop.f32.mrf.mxu0
        %v951 = vadd.f32 0.0, %v950
        %v952 = vpop.f32.mrf.mxu0
        %v953 = vpop.f32.mrf.mxu0
        %v954 = vadd.f32 0.0, %v953
        %v955 = vpop.f32.mrf.mxu0
        %956 = vmatprep.mubr.bf16.mxu0 0
        %957 = vmatmul.mubr.bf16.gmra.mxu0 %v836
        %v958 = vpop.f32.mrf.mxu0
        %v959 = vadd.f32 0.0, %v958
        %v960 = vpop.f32.mrf.mxu0
        %v961 = vpop.f32.mrf.mxu0
        %v962 = vadd.f32 0.0, %v961
        %v963 = vpop.f32.mrf.mxu0
        %964 = vmatprep.mubr.bf16.mxu0 0
        %965 = vmatmul.mubr.bf16.gmra.mxu0 %v838
        %v966 = vpop.f32.mrf.mxu0
        %v967 = vadd.f32 0.0, %v966
        %v968 = vpop.f32.mrf.mxu0
        %v969 = vpop.f32.mrf.mxu0
        %v970 = vadd.f32 0.0, %v969
        %v971 = vpop.f32.mrf.mxu0
        %972 = vmatprep.mubr.bf16.mxu0 0
        %973 = vmatmul.mubr.bf16.gmra.mxu0 %v840
        %v974 = vpop.f32.mrf.mxu0
        %v975 = vadd.f32 0.0, %v974
        %v976 = vpop.f32.mrf.mxu0
        %v977 = vpop.f32.mrf.mxu0
        %v978 = vadd.f32 0.0, %v977
        %v979 = vpop.f32.mrf.mxu0
        %980 = vmatprep.mubr.bf16.mxu0 0
        %981 = vmatmul.mubr.bf16.gmra.mxu0 %v842
        %v982 = vpop.f32.mrf.mxu0
        %v983 = vadd.f32 0.0, %v982
        %v984 = vpop.f32.mrf.mxu0
        %v985 = vpop.f32.mrf.mxu0
        %v986 = vadd.f32 0.0, %v985
        %v987 = vpop.f32.mrf.mxu0
        %988 = vmatprep.mubr.bf16.mxu0 0
        %989 = vmatmul.mubr.bf16.gmra.mxu0 %v844
        %v990 = vpop.f32.mrf.mxu0
        %v991 = vadd.f32 0.0, %v990
        %v992 = vpop.f32.mrf.mxu0
        %v993 = vpop.f32.mrf.mxu0
        %v994 = vadd.f32 0.0, %v993
        %v995 = vpop.f32.mrf.mxu0
        %996 = vmatprep.mubr.bf16.mxu0 0
        %997 = vmatmul.mubr.bf16.gmra.mxu0 %v846
        %v998 = vpop.f32.mrf.mxu0
        %v999 = vadd.f32 0.0, %v998
        %v1000 = vpop.f32.mrf.mxu0
        %v1001 = vpop.f32.mrf.mxu0
        %v1002 = vadd.f32 0.0, %v1001
        %v1003 = vpop.f32.mrf.mxu0
        %1004 = vmatprep.mubr.bf16.mxu0 0
        %1005 = vmatmul.mubr.bf16.gmra.mxu0 %v848
        %v1006 = vpop.f32.mrf.mxu0
        %v1007 = vadd.f32 0.0, %v1006
        %v1008 = vpop.f32.mrf.mxu0
        %v1009 = vpop.f32.mrf.mxu0
        %v1010 = vadd.f32 0.0, %v1009
        %v1011 = vpop.f32.mrf.mxu0
        %1012 = vmatprep.mubr.bf16.mxu0 0
        %1013 = vmatmul.mubr.bf16.gmra.mxu0 %v850
        %v1014 = vpop.f32.mrf.mxu0
        %v1015 = vadd.f32 0.0, %v1014
        %v1016 = vpop.f32.mrf.mxu0
        %v1017 = vpop.f32.mrf.mxu0
        %v1018 = vadd.f32 0.0, %v1017
        %v1019 = vpop.f32.mrf.mxu0
        %1020 = vmatprep.mubr.bf16.mxu0 0
        %1021 = vmatmul.mubr.bf16.gmra.mxu0 %v852
        %v1022 = vpop.f32.mrf.mxu0
        %v1023 = vadd.f32 0.0, %v1022
        %v1024 = vpop.f32.mrf.mxu0
        %v1025 = vpop.f32.mrf.mxu0
        %v1026 = vadd.f32 0.0, %v1025
        %v1027 = vpop.f32.mrf.mxu0
        %1028 = vmatprep.mubr.bf16.mxu0 0
        %1029 = vmatmul.mubr.bf16.gmra.mxu0 %v854
        %v1030 = vpop.f32.mrf.mxu0
        %v1031 = vadd.f32 0.0, %v1030
        %v1032 = vpop.f32.mrf.mxu0
        %v1033 = vpop.f32.mrf.mxu0
        %v1034 = vadd.f32 0.0, %v1033
        %v1035 = vpop.f32.mrf.mxu0
        %1036 = vmatprep.mubr.bf16.mxu0 0
        %1037 = vmatmul.mubr.bf16.gmra.mxu0 %v856
        %v1038 = vpop.f32.mrf.mxu0
        %v1039 = vadd.f32 0.0, %v1038
        %v1040 = vpop.f32.mrf.mxu0
        %v1041 = vpop.f32.mrf.mxu0
        %v1042 = vadd.f32 0.0, %v1041
        %v1043 = vpop.f32.mrf.mxu0
        %1044 = vmatprep.mubr.bf16.mxu0 0
        %1045 = vmatmul.mubr.bf16.gmra.mxu0 %v858
        %v1046 = vpop.f32.mrf.mxu0
        %v1047 = vadd.f32 0.0, %v1046
        %v1048 = vpop.f32.mrf.mxu0
        %v1049 = vpop.f32.mrf.mxu0
        %v1050 = vadd.f32 0.0, %v1049
        %v1051 = vpop.f32.mrf.mxu0
        %1052 = vmatprep.mubr.bf16.mxu0 0
        %1053 = vmatmul.mubr.bf16.gmra.mxu0 %v860
        %v1054 = vpop.f32.mrf.mxu0
        %v1055 = vadd.f32 0.0, %v1054
        %v1056 = vpop.f32.mrf.mxu0
        %v1057 = vpop.f32.mrf.mxu0
        %v1058 = vadd.f32 0.0, %v1057
        %v1059 = vpop.f32.mrf.mxu0
        %1060 = vmatprep.mubr.bf16.mxu0 0
        %1061 = vmatmul.mubr.bf16.gmra.mxu0 %v862
        %v1062 = vpop.f32.mrf.mxu0
        %v1063 = vadd.f32 0.0, %v1062
        %v1064 = vpop.f32.mrf.mxu0
        %v1065 = vpop.f32.mrf.mxu0
        %v1066 = vadd.f32 0.0, %v1065
        %v1067 = vpop.f32.mrf.mxu0
        %1068 = vmatprep.mubr.bf16.mxu0 0
        %1069 = vmatmul.mubr.bf16.gmra.mxu0 %v864
        %v1070 = vpop.f32.mrf.mxu0
        %v1071 = vadd.f32 0.0, %v1070
        %v1072 = vpop.f32.mrf.mxu0
        %v1073 = vpop.f32.mrf.mxu0
        %v1074 = vadd.f32 0.0, %v1073
        %v1075 = vpop.f32.mrf.mxu0
        %1076 = vmatprep.mubr.bf16.mxu0 0
        %1077 = vmatmul.mubr.bf16.gmra.mxu0 %v866
        %v1078 = vpop.f32.mrf.mxu0
        %v1079 = vadd.f32 0.0, %v1078
        %v1080 = vpop.f32.mrf.mxu0
        %v1081 = vpop.f32.mrf.mxu0
        %v1082 = vadd.f32 0.0, %v1081
        %v1083 = vpop.f32.mrf.mxu0
        %1084 = vmatprep.mubr.bf16.mxu0 0
        %1085 = vmatmul.mubr.bf16.gmra.mxu0 %v868
        %v1086 = vpop.f32.mrf.mxu0
        %v1087 = vadd.f32 0.0, %v1086
        %v1088 = vpop.f32.mrf.mxu0
        %v1089 = vpop.f32.mrf.mxu0
        %v1090 = vadd.f32 0.0, %v1089
        %v1091 = vpop.f32.mrf.mxu0
        %1092 = vmatprep.mubr.bf16.mxu0 0
        %1093 = vmatmul.mubr.bf16.gmra.mxu0 %v870
        %v1094 = vpop.f32.mrf.mxu0
        %v1095 = vadd.f32 0.0, %v1094
        %v1096 = vpop.f32.mrf.mxu0
        %v1097 = vpop.f32.mrf.mxu0
        %v1098 = vadd.f32 0.0, %v1097
        %v1099 = vpop.f32.mrf.mxu0
        %1100 = vmatprep.mubr.bf16.mxu0 0
        %1101 = vmatmul.mubr.bf16.gmra.mxu0 %v872
        %v1102 = vpop.f32.mrf.mxu0
        %v1103 = vadd.f32 0.0, %v1102
        %v1104 = vpop.f32.mrf.mxu0
        %v1105 = vpop.f32.mrf.mxu0
        %v1106 = vadd.f32 0.0, %v1105
        %v1107 = vpop.f32.mrf.mxu0
        %1108 = vmatprep.mubr.bf16.mxu0 0
        %1109 = vmatmul.mubr.bf16.gmra.mxu0 %v874
        %v1110 = vpop.f32.mrf.mxu0
        %v1111 = vadd.f32 0.0, %v1110
        %v1112 = vpop.f32.mrf.mxu0
        %v1113 = vpop.f32.mrf.mxu0
        %v1114 = vadd.f32 0.0, %v1113
        %v1115 = vpop.f32.mrf.mxu0
        %1116 = vmatprep.mubr.bf16.mxu0 0
        %1117 = vmatmul.mubr.bf16.gmra.mxu0 %v876
        %v1118 = vpop.f32.mrf.mxu0
        %v1119 = vadd.f32 0.0, %v1118
        %v1120 = vpop.f32.mrf.mxu0
        %v1121 = vpop.f32.mrf.mxu0
        %v1122 = vadd.f32 0.0, %v1121
        %v1123 = vpop.f32.mrf.mxu0
        %1124 = vmatprep.mubr.bf16.mxu0 0
        %1125 = vmatmul.mubr.bf16.gmra.mxu0 %v878
        %v1126 = vpop.f32.mrf.mxu0
        %v1127 = vadd.f32 0.0, %v1126
        %v1128 = vpop.f32.mrf.mxu0
        %v1129 = vpop.f32.mrf.mxu0
        %v1130 = vadd.f32 0.0, %v1129
        %v1131 = vpop.f32.mrf.mxu0
        %1132 = vmatprep.mubr.bf16.mxu0 0
        %1133 = vmatmul.mubr.bf16.gmra.mxu0 %v880
        %v1134 = vpop.f32.mrf.mxu0
        %v1135 = vadd.f32 0.0, %v1134
        %v1136 = vpop.f32.mrf.mxu0
        %v1137 = vpop.f32.mrf.mxu0
        %v1138 = vadd.f32 0.0, %v1137
        %v1139 = vpop.f32.mrf.mxu0
        %1140 = vmatprep.mubr.bf16.mxu0 0
        %1141 = vmatmul.mubr.bf16.gmra.mxu0 %v882
        %v1142 = vpop.f32.mrf.mxu0
        %v1143 = vadd.f32 0.0, %v1142
        %v1144 = vpop.f32.mrf.mxu0
        %v1145 = vpop.f32.mrf.mxu0
        %v1146 = vadd.f32 0.0, %v1145
        %v1147 = vpop.f32.mrf.mxu0
        %1148 = vmatprep.mubr.bf16.mxu0 0
        %1149 = vmatmul.mubr.bf16.gmra.mxu0 %v884
        %v1150 = vpop.f32.mrf.mxu0
        %v1151 = vadd.f32 0.0, %v1150
        %v1152 = vpop.f32.mrf.mxu0
        %v1153 = vpop.f32.mrf.mxu0
        %v1154 = vadd.f32 0.0, %v1153
        %v1155 = vpop.f32.mrf.mxu0
        %1156 = vmatprep.mubr.bf16.mxu0 0
        %1157 = vmatmul.mubr.bf16.gmra.mxu0 %v886
        %v1158 = vpop.f32.mrf.mxu0
        %v1159 = vadd.f32 0.0, %v1158
        %v1160 = vpop.f32.mrf.mxu0
        %v1161 = vpop.f32.mrf.mxu0
        %v1162 = vadd.f32 0.0, %v1161
        %v1163 = vpop.f32.mrf.mxu0
        %1164 = vmatprep.mubr.bf16.mxu0 0
        %1165 = vmatmul.mubr.bf16.gmra.mxu0 %v888
        %v1166 = vpop.f32.mrf.mxu0
        %v1167 = vadd.f32 0.0, %v1166
        %v1168 = vpop.f32.mrf.mxu0
        %v1169 = vpop.f32.mrf.mxu0
        %v1170 = vadd.f32 0.0, %v1169
        %v1171 = vpop.f32.mrf.mxu0
        %1172 = vmatprep.mubr.bf16.mxu0 0
        %1173 = vmatmul.mubr.bf16.gmra.mxu0 %v890
        %v1174 = vpop.f32.mrf.mxu0
        %v1175 = vadd.f32 0.0, %v1174
        %v1176 = vpop.f32.mrf.mxu0
        %v1177 = vpop.f32.mrf.mxu0
        %v1178 = vadd.f32 0.0, %v1177
        %v1179 = vpop.f32.mrf.mxu0
        %1180 = vdwg.mxu0
        %v1189 = vunpack.c.l.b16 %v787
        %v1190 = vunpack.c.l.b16 %v788
        %v1191 = vunpack.c.l.b16 %v789
        %v1192 = vunpack.c.l.b16 %v790
        %v1193 = vunpack.c.l.b16 %v791
        %v1194 = vunpack.c.l.b16 %v792
        %v1195 = vunpack.c.l.b16 %v793
        %v1196 = vunpack.c.l.b16 %v794
        %v1197 = vpack.c.b16 %v1190, %v1189
        %v1198 = vpack.c.b16 %v1192, %v1191
        %v1199 = vpack.c.b16 %v1194, %v1193
        %v1200 = vpack.c.b16 %v1196, %v1195
        %v1206 = vsel %vm827, %v656, 0
        %v1209 = vsel %vm827, %v412, 0
        %v1212 = vsel %vm827, %v420, 0
        %v1215 = vsel %vm827, %v428, 0
        %v1218 = vsel %vm827, %v436, 0
        %v1221 = vsel %vm827, %v444, 0
        %v1224 = vsel %vm827, %v452, 0
        %v1227 = vsel %vm827, %v460, 0
        %v1230 = vsel %vm827, %v657, 0
        %v1233 = vsel %vm827, %v475, 0
        %v1236 = vsel %vm827, %v483, 0
        %v1239 = vsel %vm827, %v491, 0
        %v1242 = vsel %vm827, %v499, 0
        %v1245 = vsel %vm827, %v507, 0
        %v1248 = vsel %vm827, %v515, 0
        %v1251 = vsel %vm827, %v523, 0
        %v1254 = vsel %vm827, %v658, 0
        %v1257 = vsel %vm827, %v538, 0
        %v1260 = vsel %vm827, %v546, 0
        %v1263 = vsel %vm827, %v554, 0
        %v1266 = vsel %vm827, %v562, 0
        %v1269 = vsel %vm827, %v570, 0
        %v1272 = vsel %vm827, %v578, 0
        %v1275 = vsel %vm827, %v586, 0
        %v1278 = vsel %vm827, %v659, 0
        %v1281 = vsel %vm827, %v601, 0
        %v1284 = vsel %vm827, %v609, 0
        %v1287 = vsel %vm827, %v617, 0
        %v1290 = vsel %vm827, %v625, 0
        %v1293 = vsel %vm827, %v633, 0
        %v1296 = vsel %vm827, %v641, 0
        %v1299 = vsel %vm827, %v649, 0
        %1301 = vmatprep.subr.bf16.mxu0 0
        %1302 = vmatpush1.bf16.msra.mxu0 0
        %1303 = vmatprep.subr.bf16.mxu0 0
        %1304 = vmatpush1.bf16.msra.mxu0 0
        %1305 = vmatprep.subr.bf16.mxu0 0
        %1306 = vmatpush1.bf16.msra.mxu0 0
        %1307 = vmatprep.subr.bf16.mxu0 0
        %1308 = vmatpush1.bf16.msra.mxu0 0
        %1309 = vmatprep.subr.bf16.mxu0 0
        %1310 = vmatpush1.bf16.msra.mxu0 %v1200
        %1311 = vmatprep.subr.bf16.mxu0 0
        %1312 = vmatpush1.bf16.msra.mxu0 %v1199
        %1313 = vmatprep.subr.bf16.mxu0 0
        %1314 = vmatpush1.bf16.msra.mxu0 %v1198
        %1315 = vmatprep.subr.bf16.mxu0 0
        %1316 = vmatpush1.bf16.msra.mxu0 %v1197
        %1317 = vmatprep.subr.bf16.mxu0 0
        %1318 = vmatpush2.bf16.msra.mxu0 0
        %1319 = vmatprep.subr.bf16.mxu0 0
        %1320 = vmatpush2.bf16.msra.mxu0 0
        %1321 = vmatprep.subr.bf16.mxu0 0
        %1322 = vmatpush2.bf16.msra.mxu0 0
        %1323 = vmatprep.subr.bf16.mxu0 0
        %1324 = vmatpush2.bf16.msra.mxu0 0
        %1325 = vmatprep.subr.bf16.mxu0 0
        %1326 = vmatpush2.bf16.msra.mxu0 0
        %1327 = vmatprep.subr.bf16.mxu0 0
        %1328 = vmatpush2.bf16.msra.mxu0 0
        %1329 = vmatprep.subr.bf16.mxu0 0
        %1330 = vmatpush2.bf16.msra.mxu0 0
        %1331 = vmatprep.subr.bf16.mxu0 0
        %1332 = vmatpush2.bf16.msra.mxu0 0
        %1333 = vmatprep.mubr.bf16.mxu0 0
        %1334 = vmatmul.mubr.bf16.gmra.mxu0 %v1206
        %v1335 = vpop.f32.mrf.mxu0
        %v1336 = vadd.f32 %v927, %v1335
        %v1337 = vpop.f32.mrf.mxu0
        %v1338 = vpop.f32.mrf.mxu0
        %v1339 = vadd.f32 %v930, %v1338
        %v1340 = vpop.f32.mrf.mxu0
        %1341 = vmatprep.mubr.bf16.mxu0 0
        %1342 = vmatmul.mubr.bf16.gmra.mxu0 %v1209
        %v1343 = vpop.f32.mrf.mxu0
        %v1344 = vadd.f32 %v935, %v1343
        %v1345 = vpop.f32.mrf.mxu0
        %v1346 = vpop.f32.mrf.mxu0
        %v1347 = vadd.f32 %v938, %v1346
        %v1348 = vpop.f32.mrf.mxu0
        %1349 = vmatprep.mubr.bf16.mxu0 0
        %1350 = vmatmul.mubr.bf16.gmra.mxu0 %v1212
        %v1351 = vpop.f32.mrf.mxu0
        %v1352 = vadd.f32 %v943, %v1351
        %v1353 = vpop.f32.mrf.mxu0
        %v1354 = vpop.f32.mrf.mxu0
        %v1355 = vadd.f32 %v946, %v1354
        %v1356 = vpop.f32.mrf.mxu0
        %1357 = vmatprep.mubr.bf16.mxu0 0
        %1358 = vmatmul.mubr.bf16.gmra.mxu0 %v1215
        %v1359 = vpop.f32.mrf.mxu0
        %v1360 = vadd.f32 %v951, %v1359
        %v1361 = vpop.f32.mrf.mxu0
        %v1362 = vpop.f32.mrf.mxu0
        %v1363 = vadd.f32 %v954, %v1362
        %v1364 = vpop.f32.mrf.mxu0
        %1365 = vmatprep.mubr.bf16.mxu0 0
        %1366 = vmatmul.mubr.bf16.gmra.mxu0 %v1218
        %v1367 = vpop.f32.mrf.mxu0
        %v1368 = vadd.f32 %v959, %v1367
        %v1369 = vpop.f32.mrf.mxu0
        %v1370 = vpop.f32.mrf.mxu0
        %v1371 = vadd.f32 %v962, %v1370
        %v1372 = vpop.f32.mrf.mxu0
        %1373 = vmatprep.mubr.bf16.mxu0 0
        %1374 = vmatmul.mubr.bf16.gmra.mxu0 %v1221
        %v1375 = vpop.f32.mrf.mxu0
        %v1376 = vadd.f32 %v967, %v1375
        %v1377 = vpop.f32.mrf.mxu0
        %v1378 = vpop.f32.mrf.mxu0
        %v1379 = vadd.f32 %v970, %v1378
        %v1380 = vpop.f32.mrf.mxu0
        %1381 = vmatprep.mubr.bf16.mxu0 0
        %1382 = vmatmul.mubr.bf16.gmra.mxu0 %v1224
        %v1383 = vpop.f32.mrf.mxu0
        %v1384 = vadd.f32 %v975, %v1383
        %v1385 = vpop.f32.mrf.mxu0
        %v1386 = vpop.f32.mrf.mxu0
        %v1387 = vadd.f32 %v978, %v1386
        %v1388 = vpop.f32.mrf.mxu0
        %1389 = vmatprep.mubr.bf16.mxu0 0
        %1390 = vmatmul.mubr.bf16.gmra.mxu0 %v1227
        %v1391 = vpop.f32.mrf.mxu0
        %v1392 = vadd.f32 %v983, %v1391
        %v1393 = vpop.f32.mrf.mxu0
        %v1394 = vpop.f32.mrf.mxu0
        %v1395 = vadd.f32 %v986, %v1394
        %v1396 = vpop.f32.mrf.mxu0
        %1397 = vmatprep.mubr.bf16.mxu0 0
        %1398 = vmatmul.mubr.bf16.gmra.mxu0 %v1230
        %v1399 = vpop.f32.mrf.mxu0
        %v1400 = vadd.f32 %v991, %v1399
        %v1401 = vpop.f32.mrf.mxu0
        %v1402 = vpop.f32.mrf.mxu0
        %v1403 = vadd.f32 %v994, %v1402
        %v1404 = vpop.f32.mrf.mxu0
        %1405 = vmatprep.mubr.bf16.mxu0 0
        %1406 = vmatmul.mubr.bf16.gmra.mxu0 %v1233
        %v1407 = vpop.f32.mrf.mxu0
        %v1408 = vadd.f32 %v999, %v1407
        %v1409 = vpop.f32.mrf.mxu0
        %v1410 = vpop.f32.mrf.mxu0
        %v1411 = vadd.f32 %v1002, %v1410
        %v1412 = vpop.f32.mrf.mxu0
        %1413 = vmatprep.mubr.bf16.mxu0 0
        %1414 = vmatmul.mubr.bf16.gmra.mxu0 %v1236
        %v1415 = vpop.f32.mrf.mxu0
        %v1416 = vadd.f32 %v1007, %v1415
        %v1417 = vpop.f32.mrf.mxu0
        %v1418 = vpop.f32.mrf.mxu0
        %v1419 = vadd.f32 %v1010, %v1418
        %v1420 = vpop.f32.mrf.mxu0
        %1421 = vmatprep.mubr.bf16.mxu0 0
        %1422 = vmatmul.mubr.bf16.gmra.mxu0 %v1239
        %v1423 = vpop.f32.mrf.mxu0
        %v1424 = vadd.f32 %v1015, %v1423
        %v1425 = vpop.f32.mrf.mxu0
        %v1426 = vpop.f32.mrf.mxu0
        %v1427 = vadd.f32 %v1018, %v1426
        %v1428 = vpop.f32.mrf.mxu0
        %1429 = vmatprep.mubr.bf16.mxu0 0
        %1430 = vmatmul.mubr.bf16.gmra.mxu0 %v1242
        %v1431 = vpop.f32.mrf.mxu0
        %v1432 = vadd.f32 %v1023, %v1431
        %v1433 = vpop.f32.mrf.mxu0
        %v1434 = vpop.f32.mrf.mxu0
        %v1435 = vadd.f32 %v1026, %v1434
        %v1436 = vpop.f32.mrf.mxu0
        %1437 = vmatprep.mubr.bf16.mxu0 0
        %1438 = vmatmul.mubr.bf16.gmra.mxu0 %v1245
        %v1439 = vpop.f32.mrf.mxu0
        %v1440 = vadd.f32 %v1031, %v1439
        %v1441 = vpop.f32.mrf.mxu0
        %v1442 = vpop.f32.mrf.mxu0
        %v1443 = vadd.f32 %v1034, %v1442
        %v1444 = vpop.f32.mrf.mxu0
        %1445 = vmatprep.mubr.bf16.mxu0 0
        %1446 = vmatmul.mubr.bf16.gmra.mxu0 %v1248
        %v1447 = vpop.f32.mrf.mxu0
        %v1448 = vadd.f32 %v1039, %v1447
        %v1449 = vpop.f32.mrf.mxu0
        %v1450 = vpop.f32.mrf.mxu0
        %v1451 = vadd.f32 %v1042, %v1450
        %v1452 = vpop.f32.mrf.mxu0
        %1453 = vmatprep.mubr.bf16.mxu0 0
        %1454 = vmatmul.mubr.bf16.gmra.mxu0 %v1251
        %v1455 = vpop.f32.mrf.mxu0
        %v1456 = vadd.f32 %v1047, %v1455
        %v1457 = vpop.f32.mrf.mxu0
        %v1458 = vpop.f32.mrf.mxu0
        %v1459 = vadd.f32 %v1050, %v1458
        %v1460 = vpop.f32.mrf.mxu0
        %1461 = vmatprep.mubr.bf16.mxu0 0
        %1462 = vmatmul.mubr.bf16.gmra.mxu0 %v1254
        %v1463 = vpop.f32.mrf.mxu0
        %v1464 = vadd.f32 %v1055, %v1463
        %v1465 = vpop.f32.mrf.mxu0
        %v1466 = vpop.f32.mrf.mxu0
        %v1467 = vadd.f32 %v1058, %v1466
        %v1468 = vpop.f32.mrf.mxu0
        %1469 = vmatprep.mubr.bf16.mxu0 0
        %1470 = vmatmul.mubr.bf16.gmra.mxu0 %v1257
        %v1471 = vpop.f32.mrf.mxu0
        %v1472 = vadd.f32 %v1063, %v1471
        %v1473 = vpop.f32.mrf.mxu0
        %v1474 = vpop.f32.mrf.mxu0
        %v1475 = vadd.f32 %v1066, %v1474
        %v1476 = vpop.f32.mrf.mxu0
        %1477 = vmatprep.mubr.bf16.mxu0 0
        %1478 = vmatmul.mubr.bf16.gmra.mxu0 %v1260
        %v1479 = vpop.f32.mrf.mxu0
        %v1480 = vadd.f32 %v1071, %v1479
        %v1481 = vpop.f32.mrf.mxu0
        %v1482 = vpop.f32.mrf.mxu0
        %v1483 = vadd.f32 %v1074, %v1482
        %v1484 = vpop.f32.mrf.mxu0
        %1485 = vmatprep.mubr.bf16.mxu0 0
        %1486 = vmatmul.mubr.bf16.gmra.mxu0 %v1263
        %v1487 = vpop.f32.mrf.mxu0
        %v1488 = vadd.f32 %v1079, %v1487
        %v1489 = vpop.f32.mrf.mxu0
        %v1490 = vpop.f32.mrf.mxu0
        %v1491 = vadd.f32 %v1082, %v1490
        %v1492 = vpop.f32.mrf.mxu0
        %1493 = vmatprep.mubr.bf16.mxu0 0
        %1494 = vmatmul.mubr.bf16.gmra.mxu0 %v1266
        %v1495 = vpop.f32.mrf.mxu0
        %v1496 = vadd.f32 %v1087, %v1495
        %v1497 = vpop.f32.mrf.mxu0
        %v1498 = vpop.f32.mrf.mxu0
        %v1499 = vadd.f32 %v1090, %v1498
        %v1500 = vpop.f32.mrf.mxu0
        %1501 = vmatprep.mubr.bf16.mxu0 0
        %1502 = vmatmul.mubr.bf16.gmra.mxu0 %v1269
        %v1503 = vpop.f32.mrf.mxu0
        %v1504 = vadd.f32 %v1095, %v1503
        %v1505 = vpop.f32.mrf.mxu0
        %v1506 = vpop.f32.mrf.mxu0
        %v1507 = vadd.f32 %v1098, %v1506
        %v1508 = vpop.f32.mrf.mxu0
        %1509 = vmatprep.mubr.bf16.mxu0 0
        %1510 = vmatmul.mubr.bf16.gmra.mxu0 %v1272
        %v1511 = vpop.f32.mrf.mxu0
        %v1512 = vadd.f32 %v1103, %v1511
        %v1513 = vpop.f32.mrf.mxu0
        %v1514 = vpop.f32.mrf.mxu0
        %v1515 = vadd.f32 %v1106, %v1514
        %v1516 = vpop.f32.mrf.mxu0
        %1517 = vmatprep.mubr.bf16.mxu0 0
        %1518 = vmatmul.mubr.bf16.gmra.mxu0 %v1275
        %v1519 = vpop.f32.mrf.mxu0
        %v1520 = vadd.f32 %v1111, %v1519
        %v1521 = vpop.f32.mrf.mxu0
        %v1522 = vpop.f32.mrf.mxu0
        %v1523 = vadd.f32 %v1114, %v1522
        %v1524 = vpop.f32.mrf.mxu0
        %1525 = vmatprep.mubr.bf16.mxu0 0
        %1526 = vmatmul.mubr.bf16.gmra.mxu0 %v1278
        %v1527 = vpop.f32.mrf.mxu0
        %v1528 = vadd.f32 %v1119, %v1527
        %v1529 = vpop.f32.mrf.mxu0
        %v1530 = vpop.f32.mrf.mxu0
        %v1531 = vadd.f32 %v1122, %v1530
        %v1532 = vpop.f32.mrf.mxu0
        %1533 = vmatprep.mubr.bf16.mxu0 0
        %1534 = vmatmul.mubr.bf16.gmra.mxu0 %v1281
        %v1535 = vpop.f32.mrf.mxu0
        %v1536 = vadd.f32 %v1127, %v1535
        %v1537 = vpop.f32.mrf.mxu0
        %v1538 = vpop.f32.mrf.mxu0
        %v1539 = vadd.f32 %v1130, %v1538
        %v1540 = vpop.f32.mrf.mxu0
        %1541 = vmatprep.mubr.bf16.mxu0 0
        %1542 = vmatmul.mubr.bf16.gmra.mxu0 %v1284
        %v1543 = vpop.f32.mrf.mxu0
        %v1544 = vadd.f32 %v1135, %v1543
        %v1545 = vpop.f32.mrf.mxu0
        %v1546 = vpop.f32.mrf.mxu0
        %v1547 = vadd.f32 %v1138, %v1546
        %v1548 = vpop.f32.mrf.mxu0
        %1549 = vmatprep.mubr.bf16.mxu0 0
        %1550 = vmatmul.mubr.bf16.gmra.mxu0 %v1287
        %v1551 = vpop.f32.mrf.mxu0
        %v1552 = vadd.f32 %v1143, %v1551
        %v1553 = vpop.f32.mrf.mxu0
        %v1554 = vpop.f32.mrf.mxu0
        %v1555 = vadd.f32 %v1146, %v1554
        %v1556 = vpop.f32.mrf.mxu0
        %1557 = vmatprep.mubr.bf16.mxu0 0
        %1558 = vmatmul.mubr.bf16.gmra.mxu0 %v1290
        %v1559 = vpop.f32.mrf.mxu0
        %v1560 = vadd.f32 %v1151, %v1559
        %v1561 = vpop.f32.mrf.mxu0
        %v1562 = vpop.f32.mrf.mxu0
        %v1563 = vadd.f32 %v1154, %v1562
        %v1564 = vpop.f32.mrf.mxu0
        %1565 = vmatprep.mubr.bf16.mxu0 0
        %1566 = vmatmul.mubr.bf16.gmra.mxu0 %v1293
        %v1567 = vpop.f32.mrf.mxu0
        %v1568 = vadd.f32 %v1159, %v1567
        %v1569 = vpop.f32.mrf.mxu0
        %v1570 = vpop.f32.mrf.mxu0
        %v1571 = vadd.f32 %v1162, %v1570
        %v1572 = vpop.f32.mrf.mxu0
        %1573 = vmatprep.mubr.bf16.mxu0 0
        %1574 = vmatmul.mubr.bf16.gmra.mxu0 %v1296
        %v1575 = vpop.f32.mrf.mxu0
        %v1576 = vadd.f32 %v1167, %v1575
        %v1577 = vpop.f32.mrf.mxu0
        %v1578 = vpop.f32.mrf.mxu0
        %v1579 = vadd.f32 %v1170, %v1578
        %v1580 = vpop.f32.mrf.mxu0
        %1581 = vmatprep.mubr.bf16.mxu0 0
        %1582 = vmatmul.mubr.bf16.gmra.mxu0 %v1299
        %v1583 = vpop.f32.mrf.mxu0
        %v1584 = vadd.f32 %v1175, %v1583
        %v1585 = vpop.f32.mrf.mxu0
        %v1586 = vpop.f32.mrf.mxu0
        %v1587 = vadd.f32 %v1178, %v1586
        %v1588 = vpop.f32.mrf.mxu0
        %1589 = vdwg.mxu0
        %v1590 = vld [vmem:[%s1 + $0x40] sm:$0xf]
        %v1591 = vld [vmem:[%s1 + $0x44] sm:$0xf]
        %v1592 = vld [vmem:[%s1 + $0x48] sm:$0xf]
        %v1593 = vld [vmem:[%s1 + $0x4c] sm:$0xf]
        %v1594 = vld [vmem:[%s1 + $0x50] sm:$0xf]
        %v1595 = vld [vmem:[%s1 + $0x54] sm:$0xf]
        %v1596 = vld [vmem:[%s1 + $0x58] sm:$0xf]
        %v1597 = vld [vmem:[%s1 + $0x5c] sm:$0xf]
        %v1606 = vunpack.c.l.b16 %v1590
        %v1607 = vunpack.c.l.b16 %v1591
        %v1608 = vunpack.c.l.b16 %v1592
        %v1609 = vunpack.c.l.b16 %v1593
        %v1610 = vunpack.c.l.b16 %v1594
        %v1611 = vunpack.c.l.b16 %v1595
        %v1612 = vunpack.c.l.b16 %v1596
        %v1613 = vunpack.c.l.b16 %v1597
        %v1614 = vpack.c.b16 %v1607, %v1606
        %v1615 = vpack.c.b16 %v1609, %v1608
        %v1616 = vpack.c.b16 %v1611, %v1610
        %v1617 = vpack.c.b16 %v1613, %v1612
        %v1623 = vsel %vm827, %v664, 0
        %v1626 = vsel %vm827, %v667, 0
        %v1629 = vsel %vm827, %v670, 0
        %v1632 = vsel %vm827, %v673, 0
        %v1635 = vsel %vm827, %v676, 0
        %v1638 = vsel %vm827, %v679, 0
        %v1641 = vsel %vm827, %v682, 0
        %v1644 = vsel %vm827, %v783, 0
        %v1647 = vsel %vm827, %v687, 0
        %v1650 = vsel %vm827, %v690, 0
        %v1653 = vsel %vm827, %v693, 0
        %v1656 = vsel %vm827, %v696, 0
        %v1659 = vsel %vm827, %v699, 0
        %v1662 = vsel %vm827, %v702, 0
        %v1665 = vsel %vm827, %v705, 0
        %v1668 = vsel %vm827, %v784, 0
        %v1671 = vsel %vm827, %v710, 0
        %v1674 = vsel %vm827, %v713, 0
        %v1677 = vsel %vm827, %v716, 0
        %v1680 = vsel %vm827, %v719, 0
        %v1683 = vsel %vm827, %v722, 0
        %v1686 = vsel %vm827, %v725, 0
        %v1689 = vsel %vm827, %v728, 0
        %v1692 = vsel %vm827, %v785, 0
        %v1695 = vsel %vm827, %v733, 0
        %v1698 = vsel %vm827, %v736, 0
        %v1701 = vsel %vm827, %v739, 0
        %v1704 = vsel %vm827, %v742, 0
        %v1707 = vsel %vm827, %v745, 0
        %v1710 = vsel %vm827, %v748, 0
        %v1713 = vsel %vm827, %v751, 0
        %v1716 = vsel %vm827, %v786, 0
        %1718 = vmatprep.subr.bf16.mxu0 0
        %1719 = vmatpush1.bf16.msra.mxu0 0
        %1720 = vmatprep.subr.bf16.mxu0 0
        %1721 = vmatpush1.bf16.msra.mxu0 0
        %1722 = vmatprep.subr.bf16.mxu0 0
        %1723 = vmatpush1.bf16.msra.mxu0 0
        %1724 = vmatprep.subr.bf16.mxu0 0
        %1725 = vmatpush1.bf16.msra.mxu0 0
        %1726 = vmatprep.subr.bf16.mxu0 0
        %1727 = vmatpush1.bf16.msra.mxu0 %v1617
        %1728 = vmatprep.subr.bf16.mxu0 0
        %1729 = vmatpush1.bf16.msra.mxu0 %v1616
        %1730 = vmatprep.subr.bf16.mxu0 0
        %1731 = vmatpush1.bf16.msra.mxu0 %v1615
        %1732 = vmatprep.subr.bf16.mxu0 0
        %1733 = vmatpush1.bf16.msra.mxu0 %v1614
        %1734 = vmatprep.subr.bf16.mxu0 0
        %1735 = vmatpush2.bf16.msra.mxu0 0
        %1736 = vmatprep.subr.bf16.mxu0 0
        %1737 = vmatpush2.bf16.msra.mxu0 0
        %1738 = vmatprep.subr.bf16.mxu0 0
        %1739 = vmatpush2.bf16.msra.mxu0 0
        %1740 = vmatprep.subr.bf16.mxu0 0
        %1741 = vmatpush2.bf16.msra.mxu0 0
        %1742 = vmatprep.subr.bf16.mxu0 0
        %1743 = vmatpush2.bf16.msra.mxu0 0
        %1744 = vmatprep.subr.bf16.mxu0 0
        %1745 = vmatpush2.bf16.msra.mxu0 0
        %1746 = vmatprep.subr.bf16.mxu0 0
        %1747 = vmatpush2.bf16.msra.mxu0 0
        %1748 = vmatprep.subr.bf16.mxu0 0
        %1749 = vmatpush2.bf16.msra.mxu0 0
        %1750 = vmatprep.mubr.bf16.mxu0 0
        %1751 = vmatmul.mubr.bf16.gmra.mxu0 %v1623
        %v1752 = vpop.f32.mrf.mxu0
        %v1753 = vadd.f32 0.0, %v1752
        %v1754 = vpop.f32.mrf.mxu0
        %v1755 = vpop.f32.mrf.mxu0
        %v1756 = vadd.f32 0.0, %v1755
        %v1757 = vpop.f32.mrf.mxu0
        %1758 = vmatprep.mubr.bf16.mxu0 0
        %1759 = vmatmul.mubr.bf16.gmra.mxu0 %v1626
        %v1760 = vpop.f32.mrf.mxu0
        %v1761 = vadd.f32 0.0, %v1760
        %v1762 = vpop.f32.mrf.mxu0
        %v1763 = vpop.f32.mrf.mxu0
        %v1764 = vadd.f32 0.0, %v1763
        %v1765 = vpop.f32.mrf.mxu0
        %1766 = vmatprep.mubr.bf16.mxu0 0
        %1767 = vmatmul.mubr.bf16.gmra.mxu0 %v1629
        %v1768 = vpop.f32.mrf.mxu0
        %v1769 = vadd.f32 0.0, %v1768
        %v1770 = vpop.f32.mrf.mxu0
        %v1771 = vpop.f32.mrf.mxu0
        %v1772 = vadd.f32 0.0, %v1771
        %v1773 = vpop.f32.mrf.mxu0
        %1774 = vmatprep.mubr.bf16.mxu0 0
        %1775 = vmatmul.mubr.bf16.gmra.mxu0 %v1632
        %v1776 = vpop.f32.mrf.mxu0
        %v1777 = vadd.f32 0.0, %v1776
        %v1778 = vpop.f32.mrf.mxu0
        %v1779 = vpop.f32.mrf.mxu0
        %v1780 = vadd.f32 0.0, %v1779
        %v1781 = vpop.f32.mrf.mxu0
        %1782 = vmatprep.mubr.bf16.mxu0 0
        %1783 = vmatmul.mubr.bf16.gmra.mxu0 %v1635
        %v1784 = vpop.f32.mrf.mxu0
        %v1785 = vadd.f32 0.0, %v1784
        %v1786 = vpop.f32.mrf.mxu0
        %v1787 = vpop.f32.mrf.mxu0
        %v1788 = vadd.f32 0.0, %v1787
        %v1789 = vpop.f32.mrf.mxu0
        %1790 = vmatprep.mubr.bf16.mxu0 0
        %1791 = vmatmul.mubr.bf16.gmra.mxu0 %v1638
        %v1792 = vpop.f32.mrf.mxu0
        %v1793 = vadd.f32 0.0, %v1792
        %v1794 = vpop.f32.mrf.mxu0
        %v1795 = vpop.f32.mrf.mxu0
        %v1796 = vadd.f32 0.0, %v1795
        %v1797 = vpop.f32.mrf.mxu0
        %1798 = vmatprep.mubr.bf16.mxu0 0
        %1799 = vmatmul.mubr.bf16.gmra.mxu0 %v1641
        %v1800 = vpop.f32.mrf.mxu0
        %v1801 = vadd.f32 0.0, %v1800
        %v1802 = vpop.f32.mrf.mxu0
        %v1803 = vpop.f32.mrf.mxu0
        %v1804 = vadd.f32 0.0, %v1803
        %v1805 = vpop.f32.mrf.mxu0
        %1806 = vmatprep.mubr.bf16.mxu0 0
        %1807 = vmatmul.mubr.bf16.gmra.mxu0 %v1644
        %v1808 = vpop.f32.mrf.mxu0
        %v1809 = vadd.f32 0.0, %v1808
        %v1810 = vpop.f32.mrf.mxu0
        %v1811 = vpop.f32.mrf.mxu0
        %v1812 = vadd.f32 0.0, %v1811
        %v1813 = vpop.f32.mrf.mxu0
        %1814 = vmatprep.mubr.bf16.mxu0 0
        %1815 = vmatmul.mubr.bf16.gmra.mxu0 %v1647
        %v1816 = vpop.f32.mrf.mxu0
        %v1817 = vadd.f32 0.0, %v1816
        %v1818 = vpop.f32.mrf.mxu0
        %v1819 = vpop.f32.mrf.mxu0
        %v1820 = vadd.f32 0.0, %v1819
        %v1821 = vpop.f32.mrf.mxu0
        %1822 = vmatprep.mubr.bf16.mxu0 0
        %1823 = vmatmul.mubr.bf16.gmra.mxu0 %v1650
        %v1824 = vpop.f32.mrf.mxu0
        %v1825 = vadd.f32 0.0, %v1824
        %v1826 = vpop.f32.mrf.mxu0
        %v1827 = vpop.f32.mrf.mxu0
        %v1828 = vadd.f32 0.0, %v1827
        %v1829 = vpop.f32.mrf.mxu0
        %1830 = vmatprep.mubr.bf16.mxu0 0
        %1831 = vmatmul.mubr.bf16.gmra.mxu0 %v1653
        %v1832 = vpop.f32.mrf.mxu0
        %v1833 = vadd.f32 0.0, %v1832
        %v1834 = vpop.f32.mrf.mxu0
        %v1835 = vpop.f32.mrf.mxu0
        %v1836 = vadd.f32 0.0, %v1835
        %v1837 = vpop.f32.mrf.mxu0
        %1838 = vmatprep.mubr.bf16.mxu0 0
        %1839 = vmatmul.mubr.bf16.gmra.mxu0 %v1656
        %v1840 = vpop.f32.mrf.mxu0
        %v1841 = vadd.f32 0.0, %v1840
        %v1842 = vpop.f32.mrf.mxu0
        %v1843 = vpop.f32.mrf.mxu0
        %v1844 = vadd.f32 0.0, %v1843
        %v1845 = vpop.f32.mrf.mxu0
        %1846 = vmatprep.mubr.bf16.mxu0 0
        %1847 = vmatmul.mubr.bf16.gmra.mxu0 %v1659
        %v1848 = vpop.f32.mrf.mxu0
        %v1849 = vadd.f32 0.0, %v1848
        %v1850 = vpop.f32.mrf.mxu0
        %v1851 = vpop.f32.mrf.mxu0
        %v1852 = vadd.f32 0.0, %v1851
        %v1853 = vpop.f32.mrf.mxu0
        %1854 = vmatprep.mubr.bf16.mxu0 0
        %1855 = vmatmul.mubr.bf16.gmra.mxu0 %v1662
        %v1856 = vpop.f32.mrf.mxu0
        %v1857 = vadd.f32 0.0, %v1856
        %v1858 = vpop.f32.mrf.mxu0
        %v1859 = vpop.f32.mrf.mxu0
        %v1860 = vadd.f32 0.0, %v1859
        %v1861 = vpop.f32.mrf.mxu0
        %1862 = vmatprep.mubr.bf16.mxu0 0
        %1863 = vmatmul.mubr.bf16.gmra.mxu0 %v1665
        %v1864 = vpop.f32.mrf.mxu0
        %v1865 = vadd.f32 0.0, %v1864
        %v1866 = vpop.f32.mrf.mxu0
        %v1867 = vpop.f32.mrf.mxu0
        %v1868 = vadd.f32 0.0, %v1867
        %v1869 = vpop.f32.mrf.mxu0
        %1870 = vmatprep.mubr.bf16.mxu0 0
        %1871 = vmatmul.mubr.bf16.gmra.mxu0 %v1668
        %v1872 = vpop.f32.mrf.mxu0
        %v1873 = vadd.f32 0.0, %v1872
        %v1874 = vpop.f32.mrf.mxu0
        %v1875 = vpop.f32.mrf.mxu0
        %v1876 = vadd.f32 0.0, %v1875
        %v1877 = vpop.f32.mrf.mxu0
        %1878 = vmatprep.mubr.bf16.mxu0 0
        %1879 = vmatmul.mubr.bf16.gmra.mxu0 %v1671
        %v1880 = vpop.f32.mrf.mxu0
        %v1881 = vadd.f32 0.0, %v1880
        %v1882 = vpop.f32.mrf.mxu0
        %v1883 = vpop.f32.mrf.mxu0
        %v1884 = vadd.f32 0.0, %v1883
        %v1885 = vpop.f32.mrf.mxu0
        %1886 = vmatprep.mubr.bf16.mxu0 0
        %1887 = vmatmul.mubr.bf16.gmra.mxu0 %v1674
        %v1888 = vpop.f32.mrf.mxu0
        %v1889 = vadd.f32 0.0, %v1888
        %v1890 = vpop.f32.mrf.mxu0
        %v1891 = vpop.f32.mrf.mxu0
        %v1892 = vadd.f32 0.0, %v1891
        %v1893 = vpop.f32.mrf.mxu0
        %1894 = vmatprep.mubr.bf16.mxu0 0
        %1895 = vmatmul.mubr.bf16.gmra.mxu0 %v1677
        %v1896 = vpop.f32.mrf.mxu0
        %v1897 = vadd.f32 0.0, %v1896
        %v1898 = vpop.f32.mrf.mxu0
        %v1899 = vpop.f32.mrf.mxu0
        %v1900 = vadd.f32 0.0, %v1899
        %v1901 = vpop.f32.mrf.mxu0
        %1902 = vmatprep.mubr.bf16.mxu0 0
        %1903 = vmatmul.mubr.bf16.gmra.mxu0 %v1680
        %v1904 = vpop.f32.mrf.mxu0
        %v1905 = vadd.f32 0.0, %v1904
        %v1906 = vpop.f32.mrf.mxu0
        %v1907 = vpop.f32.mrf.mxu0
        %v1908 = vadd.f32 0.0, %v1907
        %v1909 = vpop.f32.mrf.mxu0
        %1910 = vmatprep.mubr.bf16.mxu0 0
        %1911 = vmatmul.mubr.bf16.gmra.mxu0 %v1683
        %v1912 = vpop.f32.mrf.mxu0
        %v1913 = vadd.f32 0.0, %v1912
        %v1914 = vpop.f32.mrf.mxu0
        %v1915 = vpop.f32.mrf.mxu0
        %v1916 = vadd.f32 0.0, %v1915
        %v1917 = vpop.f32.mrf.mxu0
        %1918 = vmatprep.mubr.bf16.mxu0 0
        %1919 = vmatmul.mubr.bf16.gmra.mxu0 %v1686
        %v1920 = vpop.f32.mrf.mxu0
        %v1921 = vadd.f32 0.0, %v1920
        %v1922 = vpop.f32.mrf.mxu0
        %v1923 = vpop.f32.mrf.mxu0
        %v1924 = vadd.f32 0.0, %v1923
        %v1925 = vpop.f32.mrf.mxu0
        %1926 = vmatprep.mubr.bf16.mxu0 0
        %1927 = vmatmul.mubr.bf16.gmra.mxu0 %v1689
        %v1928 = vpop.f32.mrf.mxu0
        %v1929 = vadd.f32 0.0, %v1928
        %v1930 = vpop.f32.mrf.mxu0
        %v1931 = vpop.f32.mrf.mxu0
        %v1932 = vadd.f32 0.0, %v1931
        %v1933 = vpop.f32.mrf.mxu0
        %1934 = vmatprep.mubr.bf16.mxu0 0
        %1935 = vmatmul.mubr.bf16.gmra.mxu0 %v1692
        %v1936 = vpop.f32.mrf.mxu0
        %v1937 = vadd.f32 0.0, %v1936
        %v1938 = vpop.f32.mrf.mxu0
        %v1939 = vpop.f32.mrf.mxu0
        %v1940 = vadd.f32 0.0, %v1939
        %v1941 = vpop.f32.mrf.mxu0
        %1942 = vmatprep.mubr.bf16.mxu0 0
        %1943 = vmatmul.mubr.bf16.gmra.mxu0 %v1695
        %v1944 = vpop.f32.mrf.mxu0
        %v1945 = vadd.f32 0.0, %v1944
        %v1946 = vpop.f32.mrf.mxu0
        %v1947 = vpop.f32.mrf.mxu0
        %v1948 = vadd.f32 0.0, %v1947
        %v1949 = vpop.f32.mrf.mxu0
        %1950 = vmatprep.mubr.bf16.mxu0 0
        %1951 = vmatmul.mubr.bf16.gmra.mxu0 %v1698
        %v1952 = vpop.f32.mrf.mxu0
        %v1953 = vadd.f32 0.0, %v1952
        %v1954 = vpop.f32.mrf.mxu0
        %v1955 = vpop.f32.mrf.mxu0
        %v1956 = vadd.f32 0.0, %v1955
        %v1957 = vpop.f32.mrf.mxu0
        %1958 = vmatprep.mubr.bf16.mxu0 0
        %1959 = vmatmul.mubr.bf16.gmra.mxu0 %v1701
        %v1960 = vpop.f32.mrf.mxu0
        %v1961 = vadd.f32 0.0, %v1960
        %v1962 = vpop.f32.mrf.mxu0
        %v1963 = vpop.f32.mrf.mxu0
        %v1964 = vadd.f32 0.0, %v1963
        %v1965 = vpop.f32.mrf.mxu0
        %1966 = vmatprep.mubr.bf16.mxu0 0
        %1967 = vmatmul.mubr.bf16.gmra.mxu0 %v1704
        %v1968 = vpop.f32.mrf.mxu0
        %v1969 = vadd.f32 0.0, %v1968
        %v1970 = vpop.f32.mrf.mxu0
        %v1971 = vpop.f32.mrf.mxu0
        %v1972 = vadd.f32 0.0, %v1971
        %v1973 = vpop.f32.mrf.mxu0
        %1974 = vmatprep.mubr.bf16.mxu0 0
        %1975 = vmatmul.mubr.bf16.gmra.mxu0 %v1707
        %v1976 = vpop.f32.mrf.mxu0
        %v1977 = vadd.f32 0.0, %v1976
        %v1978 = vpop.f32.mrf.mxu0
        %v1979 = vpop.f32.mrf.mxu0
        %v1980 = vadd.f32 0.0, %v1979
        %v1981 = vpop.f32.mrf.mxu0
        %1982 = vmatprep.mubr.bf16.mxu0 0
        %1983 = vmatmul.mubr.bf16.gmra.mxu0 %v1710
        %v1984 = vpop.f32.mrf.mxu0
        %v1985 = vadd.f32 0.0, %v1984
        %v1986 = vpop.f32.mrf.mxu0
        %v1987 = vpop.f32.mrf.mxu0
        %v1988 = vadd.f32 0.0, %v1987
        %v1989 = vpop.f32.mrf.mxu0
        %1990 = vmatprep.mubr.bf16.mxu0 0
        %1991 = vmatmul.mubr.bf16.gmra.mxu0 %v1713
        %v1992 = vpop.f32.mrf.mxu0
        %v1993 = vadd.f32 0.0, %v1992
        %v1994 = vpop.f32.mrf.mxu0
        %v1995 = vpop.f32.mrf.mxu0
        %v1996 = vadd.f32 0.0, %v1995
        %v1997 = vpop.f32.mrf.mxu0
        %1998 = vmatprep.mubr.bf16.mxu0 0
        %1999 = vmatmul.mubr.bf16.gmra.mxu0 %v1716
        %v2000 = vpop.f32.mrf.mxu0
        %v2001 = vadd.f32 0.0, %v2000
        %v2002 = vpop.f32.mrf.mxu0
        %v2003 = vpop.f32.mrf.mxu0
        %v2004 = vadd.f32 0.0, %v2003
        %v2005 = vpop.f32.mrf.mxu0
        %2006 = vdwg.mxu0
        %v2007 = vadd.f32 %v1336, %v1753
        %v2008 = vadd.f32 %v1339, %v1756
        %v2009 = vadd.f32 %v1344, %v1761
        %v2010 = vadd.f32 %v1347, %v1764
        %v2011 = vadd.f32 %v1352, %v1769
        %v2012 = vadd.f32 %v1355, %v1772
        %v2013 = vadd.f32 %v1360, %v1777
        %v2014 = vadd.f32 %v1363, %v1780
        %v2015 = vadd.f32 %v1368, %v1785
        %v2016 = vadd.f32 %v1371, %v1788
        %v2017 = vadd.f32 %v1376, %v1793
        %v2018 = vadd.f32 %v1379, %v1796
        %v2019 = vadd.f32 %v1384, %v1801
        %v2020 = vadd.f32 %v1387, %v1804
        %v2021 = vadd.f32 %v1392, %v1809
        %v2022 = vadd.f32 %v1395, %v1812
        %v2023 = vadd.f32 %v1400, %v1817
        %v2024 = vadd.f32 %v1403, %v1820
        %v2025 = vadd.f32 %v1408, %v1825
        %v2026 = vadd.f32 %v1411, %v1828
        %v2027 = vadd.f32 %v1416, %v1833
        %v2028 = vadd.f32 %v1419, %v1836
        %v2029 = vadd.f32 %v1424, %v1841
        %v2030 = vadd.f32 %v1427, %v1844
        %v2031 = vadd.f32 %v1432, %v1849
        %v2032 = vadd.f32 %v1435, %v1852
        %v2033 = vadd.f32 %v1440, %v1857
        %v2034 = vadd.f32 %v1443, %v1860
        %v2035 = vadd.f32 %v1448, %v1865
        %v2036 = vadd.f32 %v1451, %v1868
        %v2037 = vadd.f32 %v1456, %v1873
        %v2038 = vadd.f32 %v1459, %v1876
        %v2039 = vadd.f32 %v1464, %v1881
        %v2040 = vadd.f32 %v1467, %v1884
        %v2041 = vadd.f32 %v1472, %v1889
        %v2042 = vadd.f32 %v1475, %v1892
        %v2043 = vadd.f32 %v1480, %v1897
        %v2044 = vadd.f32 %v1483, %v1900
        %v2045 = vadd.f32 %v1488, %v1905
        %v2046 = vadd.f32 %v1491, %v1908
        %v2047 = vadd.f32 %v1496, %v1913
        %v2048 = vadd.f32 %v1499, %v1916
        %v2049 = vadd.f32 %v1504, %v1921
        %v2050 = vadd.f32 %v1507, %v1924
        %v2051 = vadd.f32 %v1512, %v1929
        %v2052 = vadd.f32 %v1515, %v1932
        %v2053 = vadd.f32 %v1520, %v1937
        %v2054 = vadd.f32 %v1523, %v1940
        %v2055 = vadd.f32 %v1528, %v1945
        %v2056 = vadd.f32 %v1531, %v1948
        %v2057 = vadd.f32 %v1536, %v1953
        %v2058 = vadd.f32 %v1539, %v1956
        %v2059 = vadd.f32 %v1544, %v1961
        %v2060 = vadd.f32 %v1547, %v1964
        %v2061 = vadd.f32 %v1552, %v1969
        %v2062 = vadd.f32 %v1555, %v1972
        %v2063 = vadd.f32 %v1560, %v1977
        %v2064 = vadd.f32 %v1563, %v1980
        %v2065 = vadd.f32 %v1568, %v1985
        %v2066 = vadd.f32 %v1571, %v1988
        %v2067 = vadd.f32 %v1576, %v1993
        %v2068 = vadd.f32 %v1579, %v1996
        %v2069 = vadd.f32 %v1584, %v2001
        %v2070 = vadd.f32 %v1587, %v2004
        %2071 = vst [vmem:[%s139] sm:$0xff] %v2007
        %2072 = vst [vmem:[%s139 + $0x8] sm:$0xff] %v2008
        %2073 = vst [vmem:[%s139 + $0x10] sm:$0xff] %v2009
        %2074 = vst [vmem:[%s139 + $0x18] sm:$0xff] %v2010
        %2075 = vst [vmem:[%s139 + $0x20] sm:$0xff] %v2011
        %2076 = vst [vmem:[%s139 + $0x28] sm:$0xff] %v2012
        %2077 = vst [vmem:[%s139 + $0x30] sm:$0xff] %v2013
        %2078 = vst [vmem:[%s139 + $0x38] sm:$0xff] %v2014
        %2079 = vst [vmem:[%s139 + $0x40] sm:$0xff] %v2015
        %2080 = vst [vmem:[%s139 + $0x48] sm:$0xff] %v2016
        %2081 = vst [vmem:[%s139 + $0x50] sm:$0xff] %v2017
        %2082 = vst [vmem:[%s139 + $0x58] sm:$0xff] %v2018
        %2083 = vst [vmem:[%s139 + $0x60] sm:$0xff] %v2019
        %2084 = vst [vmem:[%s139 + $0x68] sm:$0xff] %v2020
        %2085 = vst [vmem:[%s139 + $0x70] sm:$0xff] %v2021
        %2086 = vst [vmem:[%s139 + $0x78] sm:$0xff] %v2022
        %2087 = vst [vmem:[%s139 + $0x80] sm:$0xff] %v2023
        %2088 = vst [vmem:[%s139 + $0x88] sm:$0xff] %v2024
        %2089 = vst [vmem:[%s139 + $0x90] sm:$0xff] %v2025
        %2090 = vst [vmem:[%s139 + $0x98] sm:$0xff] %v2026
        %2091 = vst [vmem:[%s139 + $0xa0] sm:$0xff] %v2027
        %2092 = vst [vmem:[%s139 + $0xa8] sm:$0xff] %v2028
        %2093 = vst [vmem:[%s139 + $0xb0] sm:$0xff] %v2029
        %2094 = vst [vmem:[%s139 + $0xb8] sm:$0xff] %v2030
        %2095 = vst [vmem:[%s139 + $0xc0] sm:$0xff] %v2031
        %2096 = vst [vmem:[%s139 + $0xc8] sm:$0xff] %v2032
        %2097 = vst [vmem:[%s139 + $0xd0] sm:$0xff] %v2033
        %2098 = vst [vmem:[%s139 + $0xd8] sm:$0xff] %v2034
        %2099 = vst [vmem:[%s139 + $0xe0] sm:$0xff] %v2035
        %2100 = vst [vmem:[%s139 + $0xe8] sm:$0xff] %v2036
        %2101 = vst [vmem:[%s139 + $0xf0] sm:$0xff] %v2037
        %2102 = vst [vmem:[%s139 + $0xf8] sm:$0xff] %v2038
        %2103 = vst [vmem:[%s139 + $0x100] sm:$0xff] %v2039
        %2104 = vst [vmem:[%s139 + $0x108] sm:$0xff] %v2040
        %2105 = vst [vmem:[%s139 + $0x110] sm:$0xff] %v2041
        %2106 = vst [vmem:[%s139 + $0x118] sm:$0xff] %v2042
        %2107 = vst [vmem:[%s139 + $0x120] sm:$0xff] %v2043
        %2108 = vst [vmem:[%s139 + $0x128] sm:$0xff] %v2044
        %2109 = vst [vmem:[%s139 + $0x130] sm:$0xff] %v2045
        %2110 = vst [vmem:[%s139 + $0x138] sm:$0xff] %v2046
        %2111 = vst [vmem:[%s139 + $0x140] sm:$0xff] %v2047
        %2112 = vst [vmem:[%s139 + $0x148] sm:$0xff] %v2048
        %2113 = vst [vmem:[%s139 + $0x150] sm:$0xff] %v2049
        %2114 = vst [vmem:[%s139 + $0x158] sm:$0xff] %v2050
        %2115 = vst [vmem:[%s139 + $0x160] sm:$0xff] %v2051
        %2116 = vst [vmem:[%s139 + $0x168] sm:$0xff] %v2052
        %2117 = vst [vmem:[%s139 + $0x170] sm:$0xff] %v2053
        %2118 = vst [vmem:[%s139 + $0x178] sm:$0xff] %v2054
        %2119 = vst [vmem:[%s139 + $0x180] sm:$0xff] %v2055
        %2120 = vst [vmem:[%s139 + $0x188] sm:$0xff] %v2056
        %2121 = vst [vmem:[%s139 + $0x190] sm:$0xff] %v2057
        %2122 = vst [vmem:[%s139 + $0x198] sm:$0xff] %v2058
        %2123 = vst [vmem:[%s139 + $0x1a0] sm:$0xff] %v2059
        %2124 = vst [vmem:[%s139 + $0x1a8] sm:$0xff] %v2060
        %2125 = vst [vmem:[%s139 + $0x1b0] sm:$0xff] %v2061
        %2126 = vst [vmem:[%s139 + $0x1b8] sm:$0xff] %v2062
        %2127 = vst [vmem:[%s139 + $0x1c0] sm:$0xff] %v2063
        %2128 = vst [vmem:[%s139 + $0x1c8] sm:$0xff] %v2064
        %2129 = vst [vmem:[%s139 + $0x1d0] sm:$0xff] %v2065
        %2130 = vst [vmem:[%s139 + $0x1d8] sm:$0xff] %v2066
        %2131 = vst [vmem:[%s139 + $0x1e0] sm:$0xff] %v2067
        %2132 = vst [vmem:[%s139 + $0x1e8] sm:$0xff] %v2068
        %2133 = vst [vmem:[%s139 + $0x1f0] sm:$0xff] %v2069
        %2134 = vst [vmem:[%s139 + $0x1f8] sm:$0xff] %v2070
        %s2135 = sand.u32 %s71, 1
        %s2136 = scalar_lea.sflag [#allocation3], %s2135
        %s2137 = sand.u32 %s71, 1
        %s2138 = smul.addr %s2137, 512
        %s2139 = scalar_lea.vmem [#allocation2], %s2138
        // Predicated region
        $region29: #{_token_embedding_impl.1} parent=27 // pred_check
          %p2140 = pneg %p81
        $region30: #{_token_embedding_impl.1} parent=27 // pred_check_branch
          %2142 = sbr.rel (%p2140) target = $region32
        $region31: #{_token_embedding_impl.1} parent=27 // pred_region
          %s2143 = smul.u32 4, %s16
          %s2145 = ssub.s32 8192, 8192
          %2146 = vsyncadd %s2136, %s2145
          %s2147 = smul.addr %s2143, 16
          %s2148 = smul.addr %s2147, 128
          %s2149 = scalar_lea.hbm %s2, %s2148
          %s2150 = sshll.u32 %s2139, 4
          %s2151 = int_to_ptr.vmem [resolvable:$true] %s2150
          %2156 = dma.vmem_to_hbm [thread:$0]  %s2151, 8192, %s2149, %s2136, 128, 128, 8
        $region32: #{_token_embedding_impl.1} parent=27 // pred_fallthru
          _
      $region28: #{_token_embedding_impl.1} parent=5 // pred_fallthru
        _
      %p2157 = scmp.le.s32.totalorder 2, %s11
      // Predicated region
      $region33: #{_token_embedding_impl.1} parent=5 // pred_check
        %p2158 = pneg %p2157
      $region34: #{_token_embedding_impl.1} parent=5 // pred_check_branch
        %2160 = sbr.rel (%p2158) target = $region36
      $region35: #{_token_embedding_impl.1} parent=5 // pred_region
        %s2161 = ssub.s32 %s11, 2
        // Predicated region
        $region37: #{_token_embedding_impl.1} parent=35 // pred_check
          %p2162 = pneg %p87
        $region38: #{_token_embedding_impl.1} parent=35 // pred_check_branch
          %2164 = sbr.rel (%p2162) target = $region40
        $region39: #{_token_embedding_impl.1} parent=35 // pred_region
          %s2165 = sand.u32 %s72, 1
          %s2166 = scalar_lea.sflag [#allocation3], %s2165
          %s2167 = sand.u32 %s72, 1
          %s2168 = smul.addr %s2167, 512
          %s2169 = scalar_lea.vmem [#allocation2], %s2168
          %2170 = dma.done %s2166, 8192
        $region40: #{_token_embedding_impl.1} parent=35 // pred_fallthru
          _
      $region36: #{_token_embedding_impl.1} parent=5 // pred_fallthru
        _
    $region6: #{_token_embedding_impl.1} parent=1 // loop_footer
      %s15 = sadd.s32 1, %s11
    $region7: #{_token_embedding_impl.1} parent=1 // loop_footer_branch
      %10 = sbr.rel target = $region3
    $region8: #{_token_embedding_impl.1} parent=1 // loop_exit
      _
    %2171 = vsyncpa [#allocation3], 1
    %s2172 = scalar_lea.sflag [#allocation3], 1
    %2173 = vsyncpa %s2172, 1

</llo_original>
